<compile_context>
chip_gen: v6e
topology: v6e:2x2x1
jax: 0.10.0
libtpu: 0.0.40
codegen_flags: <defaults>
</compile_context>

<pallas_src>
import jax
import jax.numpy as jnp
from jax import lax
from jax.experimental import pallas as pl
from jax.experimental.pallas import tpu as pltpu


def _mutual_attention_kernel(temp_ref,                 # SMEM scalar-prefetch: [num_heads] f32
                             x_ref, y_ref,             # [C, HW] activations
                             wq_ref, bq_ref,           # [C, C], [C, 1]
                             wkv_ref, bkv_ref,         # [2C, C], [2C, 1]
                             wp_ref, bp_ref,           # [C, C], [C, 1]
                             o_ref):                   # [C, HW]
    x = x_ref[...]                      # [C, HW]  (image branch)
    y = y_ref[...]                      # [C, HW]  (event branch)
    C = x.shape[0]
    num_heads = temp_ref.shape[0]
    ch = C // num_heads

    # 1x1 convs as full-channel matmuls (K/V share one stacked matmul).
    q = jnp.dot(wq_ref[...], x, preferred_element_type=jnp.float32) + bq_ref[...]
    kv = jnp.dot(wkv_ref[...], y, preferred_element_type=jnp.float32) + bkv_ref[...]
    k = kv[:C, :]                       # [C, HW]
    v = kv[C:, :]                       # [C, HW]

    # Squared row norms (F.normalize eps=1e-12 folded in as max(ss, eps^2)).
    q_ss = jnp.sum(q * q, axis=-1, keepdims=True)      # [C, 1]
    k_ss = jnp.sum(k * k, axis=-1, keepdims=True)      # [C, 1]

    # Per-row temperature from SMEM scalars (no div, no extra VMEM operand):
    # row i belongs to head h iff h*ch <= i < (h+1)*ch.  num_heads is tiny,
    # so an unrolled Python loop of compares/selects is a few VPU ops.
    row_idx1 = lax.broadcasted_iota(jnp.int32, (C, 1), 0)
    temp_rows = jnp.zeros((C, 1), jnp.float32)
    for h in range(num_heads):
        sel = (row_idx1 >= h * ch) & (row_idx1 < (h + 1) * ch)
        temp_rows = jnp.where(sel, temp_ref[h], temp_rows)

    # Fused normalization + temperature: scale the [C,C] gram instead of the
    # [C,HW] q/k slabs.  outer(row_scale, col_scale) built via a K=1 dot
    # (no sublane->lane transpose needed).
    row_scale = temp_rows * lax.rsqrt(jnp.maximum(q_ss, 1e-24))   # [C, 1]
    col_scale = lax.rsqrt(jnp.maximum(k_ss, 1e-24))               # [C, 1]
    scale = lax.dot_general(row_scale, col_scale, (((1,), (1,)), ((), ())),
                            preferred_element_type=jnp.float32)   # [C, C]

    # Full channel gram, contracting the spatial axis (no explicit transpose).
    s = lax.dot_general(q, k, (((1,), (1,)), ((), ())),
                        preferred_element_type=jnp.float32)       # [C, C]
    s = s * scale

    # Block-diagonal head mask built in-kernel (iota range compares, no DMA).
    row_idx = lax.broadcasted_iota(jnp.int32, (C, C), 0)
    col_idx = lax.broadcasted_iota(jnp.int32, (C, C), 1)
    same_head = jnp.zeros((C, C), jnp.bool_)
    for h in range(num_heads):
        lo, hi = h * ch, (h + 1) * ch
        in_r = (row_idx >= lo) & (row_idx < hi)
        in_c = (col_idx >= lo) & (col_idx < hi)
        same_head = same_head | (in_r & in_c)
    s = jnp.where(same_head, s, jnp.float32(-1e30))

    # Masked-row softmax == per-head softmax (off-head exp underflows to 0).
    s = s - jnp.max(s, axis=-1, keepdims=True)
    e = jnp.exp(s)
    attn = e * pl.reciprocal(jnp.sum(e, axis=-1, keepdims=True), approx=False)

    # attn @ V (off-head entries are exactly 0), then project_out.
    out = jnp.dot(attn, v, preferred_element_type=jnp.float32)    # [C, HW]
    o_ref[...] = (jnp.dot(wp_ref[...], out, preferred_element_type=jnp.float32)
                  + bp_ref[...])


def prepare_mutual_attention_params(params):
    """One-time host prep (hoisted out of the per-call hot path)."""
    wq, bq, wk, bk, wv, bv, wp, bp, temp = params
    C = wq.shape[0]
    wkv = jnp.concatenate([wk, wv], axis=0).astype(jnp.float32)              # [2C, C]
    bkv = jnp.concatenate([bk, bv], axis=0).reshape(2 * C, 1).astype(jnp.float32)
    return (wq.astype(jnp.float32),
            bq.reshape(C, 1).astype(jnp.float32),
            wkv, bkv,
            wp.astype(jnp.float32),
            bp.reshape(C, 1).astype(jnp.float32),
            temp.reshape(-1).astype(jnp.float32))                            # [num_heads]


@jax.jit
def mutual_attention_forward(x, y, wq, bq, wkv, bkv, wp, bp, temp_flat):
    """x, y: [B, C, H, W] -> [B, C, H, W] (NCHW, matching the PyTorch module)."""
    B, C, H, W = x.shape
    HW = H * W
    xf = x.reshape(B, C, HW).astype(jnp.float32)
    yf = y.reshape(B, C, HW).astype(jnp.float32)

    out = pl.pallas_call(
        _mutual_attention_kernel,
        out_shape=jax.ShapeDtypeStruct((B, C, HW), jnp.float32),
        grid_spec=pltpu.PrefetchScalarGridSpec(
            num_scalar_prefetch=1,           # temperature -> SMEM
            grid=(B,),
            in_specs=[
                pl.BlockSpec((pl.Squeezed(), C, HW), lambda b, t: (b, 0, 0)),  # x
                pl.BlockSpec((pl.Squeezed(), C, HW), lambda b, t: (b, 0, 0)),  # y
                pl.BlockSpec((C, C), lambda b, t: (0, 0)),        # Wq
                pl.BlockSpec((C, 1), lambda b, t: (0, 0)),        # bq
                pl.BlockSpec((2 * C, C), lambda b, t: (0, 0)),    # Wkv (stacked)
                pl.BlockSpec((2 * C, 1), lambda b, t: (0, 0)),    # bkv (stacked)
                pl.BlockSpec((C, C), lambda b, t: (0, 0)),        # Wp (project_out)
                pl.BlockSpec((C, 1), lambda b, t: (0, 0)),        # bp
            ],
            out_specs=pl.BlockSpec((pl.Squeezed(), C, HW), lambda b, t: (b, 0, 0)),
        ),
        compiler_params=pltpu.CompilerParams(
            dimension_semantics=("parallel",)),   # v7x: one batch per TensorCore
    )(temp_flat, xf, yf, wq, bq, wkv, bkv, wp, bp)

    return out.reshape(B, C, H, W)


def mutual_attention_pallas(x, y, params, num_heads):
    del num_heads  # derived in-kernel from the temperature length
    prepped = prepare_mutual_attention_params(params)
    return mutual_attention_forward(x, y, *prepped)


def mutual_attention_reference(x, y, params, num_heads):
    """Pure-JAX reference mirroring the PyTorch forward."""
    wq, bq, wk, bk, wv, bv, wp, bp, temp = params
    B, C, H, W = x.shape
    HW = H * W
    ch = C // num_heads

    def conv1x1(inp, w, b):   # inp [B, C, S]
        return jnp.einsum('oc,bcs->bos', w, inp) + b[None, :, None]

    xf = x.reshape(B, C, HW)
    yf = y.reshape(B, C, HW)
    q = conv1x1(xf, wq, bq).reshape(B, num_heads, ch, HW)
    k = conv1x1(yf, wk, bk).reshape(B, num_heads, ch, HW)
    v = conv1x1(yf, wv, bv).reshape(B, num_heads, ch, HW)
    qn = q / jnp.maximum(jnp.linalg.norm(q, axis=-1, keepdims=True), 1e-12)
    kn = k / jnp.maximum(jnp.linalg.norm(k, axis=-1, keepdims=True), 1e-12)
    attn = jnp.einsum('bhcs,bhds->bhcd', qn, kn) * temp[None]
    attn = jax.nn.softmax(attn, axis=-1)
    out = jnp.einsum('bhcd,bhds->bhcs', attn, v).reshape(B, C, HW)
    out = conv1x1(out, wp, bp)
    return out.reshape(B, C, H, W)


if __name__ == "__main__":
    B, C, H, W = 2, 32, 16, 16
    NUM_HEADS = 4

    key = jax.random.PRNGKey(0)
    keys = jax.random.split(key, 12)

    x = jax.random.normal(keys[0], (B, C, H, W), jnp.float32)
    y = jax.random.normal(keys[1], (B, C, H, W), jnp.float32)

    # Deterministic parameter init (bias=True). Conv2d 1x1 weights -> [C, C].
    s = 1.0 / jnp.sqrt(jnp.float32(C))
    wq = jax.random.normal(keys[2], (C, C), jnp.float32) * s
    bq = jax.random.normal(keys[3], (C,), jnp.float32) * 0.02
    wk = jax.random.normal(keys[4], (C, C), jnp.float32) * s
    bk = jax.random.normal(keys[5], (C,), jnp.float32) * 0.02
    wv = jax.random.normal(keys[6], (C, C), jnp.float32) * s
    bv = jax.random.normal(keys[7], (C,), jnp.float32) * 0.02
    wp = jax.random.normal(keys[8], (C, C), jnp.float32) * s
    bp = jax.random.normal(keys[9], (C,), jnp.float32) * 0.02
    temperature = jnp.ones((NUM_HEADS, 1, 1), jnp.float32)   # nn.Parameter(torch.ones)

    params = (wq, bq, wk, bk, wv, bv, wp, bp, temperature)

    # Host prep hoisted out of the hot path (done once, reused every call).
    prepped = prepare_mutual_attention_params(params)
    out = mutual_attention_forward(x, y, *prepped)
    out = jax.block_until_ready(out)

    ref = mutual_attention_reference(x, y, params, NUM_HEADS)
    assert out.shape == (B, C, H, W)
    assert jnp.allclose(out, ref, atol=1e-4, rtol=1e-4), \
        f"max abs err = {jnp.max(jnp.abs(out - ref))}"

    print("KERNEL_OK")
</pallas_src>

<mosaic_0001>
module attributes {stable_mosaic.version = 11 : i64} {
  func.func @_mutual_attention_kernel(%arg0: i32, %arg1: memref<4xf32, #tpu.memory_space<smem>>, %arg2: memref<1x32x256xf32, #tpu.memory_space<vmem>>, %arg3: memref<1x32x256xf32, #tpu.memory_space<vmem>>, %arg4: memref<32x32xf32, #tpu.memory_space<vmem>>, %arg5: memref<32x1xf32, #tpu.memory_space<vmem>>, %arg6: memref<64x32xf32, #tpu.memory_space<vmem>>, %arg7: memref<64x1xf32, #tpu.memory_space<vmem>>, %arg8: memref<32x32xf32, #tpu.memory_space<vmem>>, %arg9: memref<32x1xf32, #tpu.memory_space<vmem>>, %arg10: memref<1x32x256xf32, #tpu.memory_space<vmem>>) attributes {dimension_semantics = [#tpu.dimension_semantics<parallel>], iteration_bounds = array<i64: 2>, scalar_prefetch = 1 : i64, scratch_operands = 0 : i64, tpu.core_type = #tpu.core_type<tc>, window_params = [{transform_indices = @transform_0, window_bounds = array<i64: 1, 32, 256>}, {transform_indices = @transform_1, window_bounds = array<i64: 1, 32, 256>}, {pipeline_mode = #tpu.pipeline_mode<synchronous>, transform_indices = @transform_2, window_bounds = array<i64: 32, 32>}, {pipeline_mode = #tpu.pipeline_mode<synchronous>, transform_indices = @transform_3, window_bounds = array<i64: 32, 1>}, {pipeline_mode = #tpu.pipeline_mode<synchronous>, transform_indices = @transform_4, window_bounds = array<i64: 64, 32>}, {pipeline_mode = #tpu.pipeline_mode<synchronous>, transform_indices = @transform_5, window_bounds = array<i64: 64, 1>}, {pipeline_mode = #tpu.pipeline_mode<synchronous>, transform_indices = @transform_6, window_bounds = array<i64: 32, 32>}, {pipeline_mode = #tpu.pipeline_mode<synchronous>, transform_indices = @transform_7, window_bounds = array<i64: 32, 1>}, {transform_indices = @transform_8, window_bounds = array<i64: 1, 32, 256>}]} {
    %c0 = arith.constant 0 : index
    %c0_0 = arith.constant 0 : index
    %c0_1 = arith.constant 0 : index
    %0 = vector.load %arg2[%c0, %c0_0, %c0_1] : memref<1x32x256xf32, #tpu.memory_space<vmem>>, vector<1x32x256xf32>
    %1 = vector.shape_cast %0 : vector<1x32x256xf32> to vector<32x256xf32>
    %c0_2 = arith.constant 0 : index
    %c0_3 = arith.constant 0 : index
    %c0_4 = arith.constant 0 : index
    %2 = vector.load %arg3[%c0_2, %c0_3, %c0_4] : memref<1x32x256xf32, #tpu.memory_space<vmem>>, vector<1x32x256xf32>
    %3 = vector.shape_cast %2 : vector<1x32x256xf32> to vector<32x256xf32>
    %c0_5 = arith.constant 0 : index
    %c0_6 = arith.constant 0 : index
    %4 = vector.load %arg4[%c0_5, %c0_6] : memref<32x32xf32, #tpu.memory_space<vmem>>, vector<32x32xf32>
    %cst = arith.constant dense<0.000000e+00> : vector<32x256xf32>
    %5 = tpu.matmul %4, %1, %cst {dimension_numbers = #tpu.dot_dimension_numbers<[1], [0], [0], [1], [0, 0, 1, 1], [], []>} : vector<32x32xf32>, vector<32x256xf32>, vector<32x256xf32> -> vector<32x256xf32>
    %c0_7 = arith.constant 0 : index
    %c0_8 = arith.constant 0 : index
    %6 = vector.load %arg5[%c0_7, %c0_8] : memref<32x1xf32, #tpu.memory_space<vmem>>, vector<32x1xf32>
    %7 = vector.broadcast %6 : vector<32x1xf32> to vector<32x256xf32>
    %8 = arith.addf %5, %7 : vector<32x256xf32>
    %c0_9 = arith.constant 0 : index
    %c0_10 = arith.constant 0 : index
    %9 = vector.load %arg6[%c0_9, %c0_10] : memref<64x32xf32, #tpu.memory_space<vmem>>, vector<64x32xf32>
    %cst_11 = arith.constant dense<0.000000e+00> : vector<64x256xf32>
    %10 = tpu.matmul %9, %3, %cst_11 {dimension_numbers = #tpu.dot_dimension_numbers<[1], [0], [0], [1], [0, 0, 1, 1], [], []>} : vector<64x32xf32>, vector<32x256xf32>, vector<64x256xf32> -> vector<64x256xf32>
    %c0_12 = arith.constant 0 : index
    %c0_13 = arith.constant 0 : index
    %11 = vector.load %arg7[%c0_12, %c0_13] : memref<64x1xf32, #tpu.memory_space<vmem>>, vector<64x1xf32>
    %12 = vector.broadcast %11 : vector<64x1xf32> to vector<64x256xf32>
    %13 = arith.addf %10, %12 : vector<64x256xf32>
    %14 = vector.extract_strided_slice %13 {offsets = [0, 0], sizes = [32, 256], strides = [1, 1]} : vector<64x256xf32> to vector<32x256xf32>
    %15 = vector.extract_strided_slice %13 {offsets = [32, 0], sizes = [32, 256], strides = [1, 1]} : vector<64x256xf32> to vector<32x256xf32>
    %16 = arith.mulf %8, %8 : vector<32x256xf32>
    %cst_14 = arith.constant dense<0.000000e+00> : vector<32xf32>
    %17 = vector.multi_reduction <add>, %16, %cst_14 [1] : vector<32x256xf32> to vector<32xf32>
    %18 = vector.shape_cast %17 : vector<32xf32> to vector<32x1xf32>
    %19 = arith.mulf %14, %14 : vector<32x256xf32>
    %cst_15 = arith.constant dense<0.000000e+00> : vector<32xf32>
    %20 = vector.multi_reduction <add>, %19, %cst_15 [1] : vector<32x256xf32> to vector<32xf32>
    %21 = vector.shape_cast %20 : vector<32xf32> to vector<32x1xf32>
    %22 = tpu.iota {dimensions = array<i32: 0>} : vector<32x1xi32>
    %cst_16 = arith.constant 0.000000e+00 : f32
    %23 = vector.broadcast %cst_16 : f32 to vector<32x1xf32>
    %c0_i32 = arith.constant 0 : i32
    %24 = vector.broadcast %c0_i32 : i32 to vector<32x1xi32>
    %25 = arith.cmpi sge, %22, %24 : vector<32x1xi32>
    %c8_i32 = arith.constant 8 : i32
    %26 = vector.broadcast %c8_i32 : i32 to vector<32x1xi32>
    %27 = arith.cmpi slt, %22, %26 : vector<32x1xi32>
    %28 = arith.andi %25, %27 : vector<32x1xi1>
    %c0_17 = arith.constant 0 : index
    %29 = memref.load %arg1[%c0_17] : memref<4xf32, #tpu.memory_space<smem>>
    %30 = vector.broadcast %29 : f32 to vector<32x1xf32>
    %31 = arith.select %28, %30, %23 : vector<32x1xi1>, vector<32x1xf32>
    %c8_i32_18 = arith.constant 8 : i32
    %32 = vector.broadcast %c8_i32_18 : i32 to vector<32x1xi32>
    %33 = arith.cmpi sge, %22, %32 : vector<32x1xi32>
    %c16_i32 = arith.constant 16 : i32
    %34 = vector.broadcast %c16_i32 : i32 to vector<32x1xi32>
    %35 = arith.cmpi slt, %22, %34 : vector<32x1xi32>
    %36 = arith.andi %33, %35 : vector<32x1xi1>
    %c1 = arith.constant 1 : index
    %37 = memref.load %arg1[%c1] : memref<4xf32, #tpu.memory_space<smem>>
    %38 = vector.broadcast %37 : f32 to vector<32x1xf32>
    %39 = arith.select %36, %38, %31 : vector<32x1xi1>, vector<32x1xf32>
    %c16_i32_19 = arith.constant 16 : i32
    %40 = vector.broadcast %c16_i32_19 : i32 to vector<32x1xi32>
    %41 = arith.cmpi sge, %22, %40 : vector<32x1xi32>
    %c24_i32 = arith.constant 24 : i32
    %42 = vector.broadcast %c24_i32 : i32 to vector<32x1xi32>
    %43 = arith.cmpi slt, %22, %42 : vector<32x1xi32>
    %44 = arith.andi %41, %43 : vector<32x1xi1>
    %c2 = arith.constant 2 : index
    %45 = memref.load %arg1[%c2] : memref<4xf32, #tpu.memory_space<smem>>
    %46 = vector.broadcast %45 : f32 to vector<32x1xf32>
    %47 = arith.select %44, %46, %39 : vector<32x1xi1>, vector<32x1xf32>
    %c24_i32_20 = arith.constant 24 : i32
    %48 = vector.broadcast %c24_i32_20 : i32 to vector<32x1xi32>
    %49 = arith.cmpi sge, %22, %48 : vector<32x1xi32>
    %c32_i32 = arith.constant 32 : i32
    %50 = vector.broadcast %c32_i32 : i32 to vector<32x1xi32>
    %51 = arith.cmpi slt, %22, %50 : vector<32x1xi32>
    %52 = arith.andi %49, %51 : vector<32x1xi1>
    %c3 = arith.constant 3 : index
    %53 = memref.load %arg1[%c3] : memref<4xf32, #tpu.memory_space<smem>>
    %54 = vector.broadcast %53 : f32 to vector<32x1xf32>
    %55 = arith.select %52, %54, %47 : vector<32x1xi1>, vector<32x1xf32>
    %cst_21 = arith.constant 1.000000e-24 : f32
    %56 = vector.broadcast %cst_21 : f32 to vector<32x1xf32>
    %57 = arith.maximumf %18, %56 : vector<32x1xf32>
    %58 = math.rsqrt %57 : vector<32x1xf32>
    %59 = arith.mulf %55, %58 : vector<32x1xf32>
    %cst_22 = arith.constant 1.000000e-24 : f32
    %60 = vector.broadcast %cst_22 : f32 to vector<32x1xf32>
    %61 = arith.maximumf %21, %60 : vector<32x1xf32>
    %62 = math.rsqrt %61 : vector<32x1xf32>
    %cst_23 = arith.constant dense<0.000000e+00> : vector<32x32xf32>
    %63 = tpu.matmul %59, %62, %cst_23 {dimension_numbers = #tpu.dot_dimension_numbers<[1], [1], [0], [0], [0, 0, 1, 0], [], []>} : vector<32x1xf32>, vector<32x1xf32>, vector<32x32xf32> -> vector<32x32xf32>
    %cst_24 = arith.constant dense<0.000000e+00> : vector<32x32xf32>
    %64 = tpu.matmul %8, %14, %cst_24 {dimension_numbers = #tpu.dot_dimension_numbers<[1], [1], [0], [0], [0, 0, 1, 0], [], []>} : vector<32x256xf32>, vector<32x256xf32>, vector<32x32xf32> -> vector<32x32xf32>
    %65 = arith.mulf %64, %63 : vector<32x32xf32>
    %66 = tpu.iota {dimensions = array<i32: 0>} : vector<32x32xi32>
    %67 = tpu.iota {dimensions = array<i32: 1>} : vector<32x32xi32>
    %false = arith.constant false
    %68 = vector.broadcast %false : i1 to vector<32x32xi1>
    %c0_i32_25 = arith.constant 0 : i32
    %69 = vector.broadcast %c0_i32_25 : i32 to vector<32x32xi32>
    %70 = arith.cmpi sge, %66, %69 : vector<32x32xi32>
    %c8_i32_26 = arith.constant 8 : i32
    %71 = vector.broadcast %c8_i32_26 : i32 to vector<32x32xi32>
    %72 = arith.cmpi slt, %66, %71 : vector<32x32xi32>
    %73 = arith.andi %70, %72 : vector<32x32xi1>
    %c0_i32_27 = arith.constant 0 : i32
    %74 = vector.broadcast %c0_i32_27 : i32 to vector<32x32xi32>
    %75 = arith.cmpi sge, %67, %74 : vector<32x32xi32>
    %c8_i32_28 = arith.constant 8 : i32
    %76 = vector.broadcast %c8_i32_28 : i32 to vector<32x32xi32>
    %77 = arith.cmpi slt, %67, %76 : vector<32x32xi32>
    %78 = arith.andi %75, %77 : vector<32x32xi1>
    %79 = arith.andi %73, %78 : vector<32x32xi1>
    %80 = arith.ori %68, %79 : vector<32x32xi1>
    %c8_i32_29 = arith.constant 8 : i32
    %81 = vector.broadcast %c8_i32_29 : i32 to vector<32x32xi32>
    %82 = arith.cmpi sge, %66, %81 : vector<32x32xi32>
    %c16_i32_30 = arith.constant 16 : i32
    %83 = vector.broadcast %c16_i32_30 : i32 to vector<32x32xi32>
    %84 = arith.cmpi slt, %66, %83 : vector<32x32xi32>
    %85 = arith.andi %82, %84 : vector<32x32xi1>
    %c8_i32_31 = arith.constant 8 : i32
    %86 = vector.broadcast %c8_i32_31 : i32 to vector<32x32xi32>
    %87 = arith.cmpi sge, %67, %86 : vector<32x32xi32>
    %c16_i32_32 = arith.constant 16 : i32
    %88 = vector.broadcast %c16_i32_32 : i32 to vector<32x32xi32>
    %89 = arith.cmpi slt, %67, %88 : vector<32x32xi32>
    %90 = arith.andi %87, %89 : vector<32x32xi1>
    %91 = arith.andi %85, %90 : vector<32x32xi1>
    %92 = arith.ori %80, %91 : vector<32x32xi1>
    %c16_i32_33 = arith.constant 16 : i32
    %93 = vector.broadcast %c16_i32_33 : i32 to vector<32x32xi32>
    %94 = arith.cmpi sge, %66, %93 : vector<32x32xi32>
    %c24_i32_34 = arith.constant 24 : i32
    %95 = vector.broadcast %c24_i32_34 : i32 to vector<32x32xi32>
    %96 = arith.cmpi slt, %66, %95 : vector<32x32xi32>
    %97 = arith.andi %94, %96 : vector<32x32xi1>
    %c16_i32_35 = arith.constant 16 : i32
    %98 = vector.broadcast %c16_i32_35 : i32 to vector<32x32xi32>
    %99 = arith.cmpi sge, %67, %98 : vector<32x32xi32>
    %c24_i32_36 = arith.constant 24 : i32
    %100 = vector.broadcast %c24_i32_36 : i32 to vector<32x32xi32>
    %101 = arith.cmpi slt, %67, %100 : vector<32x32xi32>
    %102 = arith.andi %99, %101 : vector<32x32xi1>
    %103 = arith.andi %97, %102 : vector<32x32xi1>
    %104 = arith.ori %92, %103 : vector<32x32xi1>
    %c24_i32_37 = arith.constant 24 : i32
    %105 = vector.broadcast %c24_i32_37 : i32 to vector<32x32xi32>
    %106 = arith.cmpi sge, %66, %105 : vector<32x32xi32>
    %c32_i32_38 = arith.constant 32 : i32
    %107 = vector.broadcast %c32_i32_38 : i32 to vector<32x32xi32>
    %108 = arith.cmpi slt, %66, %107 : vector<32x32xi32>
    %109 = arith.andi %106, %108 : vector<32x32xi1>
    %c24_i32_39 = arith.constant 24 : i32
    %110 = vector.broadcast %c24_i32_39 : i32 to vector<32x32xi32>
    %111 = arith.cmpi sge, %67, %110 : vector<32x32xi32>
    %c32_i32_40 = arith.constant 32 : i32
    %112 = vector.broadcast %c32_i32_40 : i32 to vector<32x32xi32>
    %113 = arith.cmpi slt, %67, %112 : vector<32x32xi32>
    %114 = arith.andi %111, %113 : vector<32x32xi1>
    %115 = arith.andi %109, %114 : vector<32x32xi1>
    %116 = arith.ori %104, %115 : vector<32x32xi1>
    %cst_41 = arith.constant -1.000000e+30 : f32
    %117 = vector.broadcast %cst_41 : f32 to vector<32x32xf32>
    %118 = arith.select %116, %65, %117 : vector<32x32xi1>, vector<32x32xf32>
    %cst_42 = arith.constant dense<0xFF800000> : vector<32xf32>
    %119 = vector.multi_reduction <maximumf>, %118, %cst_42 [1] : vector<32x32xf32> to vector<32xf32>
    %120 = vector.shape_cast %119 : vector<32xf32> to vector<32x1xf32>
    %121 = vector.broadcast %120 : vector<32x1xf32> to vector<32x32xf32>
    %122 = arith.subf %118, %121 : vector<32x32xf32>
    %123 = math.exp %122 : vector<32x32xf32>
    %cst_43 = arith.constant dense<0.000000e+00> : vector<32xf32>
    %124 = vector.multi_reduction <add>, %123, %cst_43 [1] : vector<32x32xf32> to vector<32xf32>
    %125 = vector.shape_cast %124 : vector<32xf32> to vector<32x1xf32>
    %126 = tpu.reciprocal %125 : vector<32x1xf32> -> vector<32x1xf32>
    %127 = vector.broadcast %126 : vector<32x1xf32> to vector<32x32xf32>
    %128 = arith.mulf %123, %127 : vector<32x32xf32>
    %cst_44 = arith.constant dense<0.000000e+00> : vector<32x256xf32>
    %129 = tpu.matmul %128, %15, %cst_44 {dimension_numbers = #tpu.dot_dimension_numbers<[1], [0], [0], [1], [0, 0, 1, 1], [], []>} : vector<32x32xf32>, vector<32x256xf32>, vector<32x256xf32> -> vector<32x256xf32>
    %c0_45 = arith.constant 0 : index
    %c0_46 = arith.constant 0 : index
    %130 = vector.load %arg8[%c0_45, %c0_46] : memref<32x32xf32, #tpu.memory_space<vmem>>, vector<32x32xf32>
    %cst_47 = arith.constant dense<0.000000e+00> : vector<32x256xf32>
    %131 = tpu.matmul %130, %129, %cst_47 {dimension_numbers = #tpu.dot_dimension_numbers<[1], [0], [0], [1], [0, 0, 1, 1], [], []>} : vector<32x32xf32>, vector<32x256xf32>, vector<32x256xf32> -> vector<32x256xf32>
    %c0_48 = arith.constant 0 : index
    %c0_49 = arith.constant 0 : index
    %132 = vector.load %arg9[%c0_48, %c0_49] : memref<32x1xf32, #tpu.memory_space<vmem>>, vector<32x1xf32>
    %133 = vector.broadcast %132 : vector<32x1xf32> to vector<32x256xf32>
    %134 = arith.addf %131, %133 : vector<32x256xf32>
    %c0_50 = arith.constant 0 : index
    %c0_51 = arith.constant 0 : index
    %c0_52 = arith.constant 0 : index
    %135 = vector.load %arg10[%c0_50, %c0_51, %c0_52] : memref<1x32x256xf32, #tpu.memory_space<vmem>>, vector<1x32x256xf32>
    %136 = vector.shape_cast %135 : vector<1x32x256xf32> to vector<32x256xf32>
    %137 = vector.shape_cast %134 : vector<32x256xf32> to vector<1x32x256xf32>
    tpu.vector_store %arg10[%c0_50, %c0_51, %c0_52], %137 {strides = array<i32>} : memref<1x32x256xf32, #tpu.memory_space<vmem>>, vector<1x32x256xf32>,
    return
  }
  func.func @transform_0(%arg0: i32, %arg1: memref<4xf32, #tpu.memory_space<smem>>) -> (i32, i32, i32) {
    %c0_i32 = arith.constant 0 : i32
    %c0_i32_0 = arith.constant 0 : i32
    %c0_i32_1 = arith.constant 0 : i32
    return %arg0, %c0_i32, %c0_i32_0 : i32, i32, i32
  }
  func.func @transform_1(%arg0: i32, %arg1: memref<4xf32, #tpu.memory_space<smem>>) -> (i32, i32, i32) {
    %c0_i32 = arith.constant 0 : i32
    %c0_i32_0 = arith.constant 0 : i32
    %c0_i32_1 = arith.constant 0 : i32
    return %arg0, %c0_i32, %c0_i32_0 : i32, i32, i32
  }
  func.func @transform_2(%arg0: i32, %arg1: memref<4xf32, #tpu.memory_space<smem>>) -> (i32, i32) {
    %c0_i32 = arith.constant 0 : i32
    %c0_i32_0 = arith.constant 0 : i32
    %c0_i32_1 = arith.constant 0 : i32
    return %c0_i32, %c0_i32_0 : i32, i32
  }
  func.func @transform_3(%arg0: i32, %arg1: memref<4xf32, #tpu.memory_space<smem>>) -> (i32, i32) {
    %c0_i32 = arith.constant 0 : i32
    %c0_i32_0 = arith.constant 0 : i32
    %c0_i32_1 = arith.constant 0 : i32
    return %c0_i32, %c0_i32_0 : i32, i32
  }
  func.func @transform_4(%arg0: i32, %arg1: memref<4xf32, #tpu.memory_space<smem>>) -> (i32, i32) {
    %c0_i32 = arith.constant 0 : i32
    %c0_i32_0 = arith.constant 0 : i32
    %c0_i32_1 = arith.constant 0 : i32
    return %c0_i32, %c0_i32_0 : i32, i32
  }
  func.func @transform_5(%arg0: i32, %arg1: memref<4xf32, #tpu.memory_space<smem>>) -> (i32, i32) {
    %c0_i32 = arith.constant 0 : i32
    %c0_i32_0 = arith.constant 0 : i32
    %c0_i32_1 = arith.constant 0 : i32
    return %c0_i32, %c0_i32_0 : i32, i32
  }
  func.func @transform_6(%arg0: i32, %arg1: memref<4xf32, #tpu.memory_space<smem>>) -> (i32, i32) {
    %c0_i32 = arith.constant 0 : i32
    %c0_i32_0 = arith.constant 0 : i32
    %c0_i32_1 = arith.constant 0 : i32
    return %c0_i32, %c0_i32_0 : i32, i32
  }
  func.func @transform_7(%arg0: i32, %arg1: memref<4xf32, #tpu.memory_space<smem>>) -> (i32, i32) {
    %c0_i32 = arith.constant 0 : i32
    %c0_i32_0 = arith.constant 0 : i32
    %c0_i32_1 = arith.constant 0 : i32
    return %c0_i32, %c0_i32_0 : i32, i32
  }
  func.func @transform_8(%arg0: i32, %arg1: memref<4xf32, #tpu.memory_space<smem>>) -> (i32, i32, i32) {
    %c0_i32 = arith.constant 0 : i32
    %c0_i32_0 = arith.constant 0 : i32
    %c0_i32_1 = arith.constant 0 : i32
    return %arg0, %c0_i32, %c0_i32_0 : i32, i32, i32
  }
}

</mosaic_0001>

<llo_original>
// kernel: mutual_attention_forward.1
$region0: #{mutual_attention_forward.1}
  #allocation0 [shape = 'u32[]', space=smem, size = 0x4, offset = 0x4, fixed_abs, tag = 'smem constant byte address 0x4 - core index']
  #allocation1 [shape = 'u32[144,128]{1,0:T(1,128)}', space=vmem, size = 0x12000, scoped, tag = 'internal scratch']
  #allocation2 [shape = 's32[1]{0}', space=sflag, size = 0x4, scoped, tag = 'scoped memory for mutual_attention_forward.1']
  #allocation3 [shape = 'u8[512]{0}', space=smem, size = 0x200, scoped, tag = 'prefetched SMEM operand 0']
  %s0 = inlined_call_operand.vmem [shape: f32[4], index: 0, kind: input, shape index: {}]
  %s1 = inlined_call_operand.vmem [shape: f32[2,32,256], index: 1, kind: input, shape index: {}]
  %s2 = inlined_call_operand.vmem [shape: f32[2,32,256], index: 2, kind: input, shape index: {}]
  %s3 = inlined_call_operand.vmem [shape: f32[32,32], index: 3, kind: input, shape index: {}]
  %s4 = inlined_call_operand.vmem [shape: f32[32,1], index: 4, kind: input, shape index: {}]
  %s5 = inlined_call_operand.vmem [shape: f32[64,32], index: 5, kind: input, shape index: {}]
  %s6 = inlined_call_operand.vmem [shape: f32[64,1], index: 6, kind: input, shape index: {}]
  %s7 = inlined_call_operand.vmem [shape: f32[32,32], index: 7, kind: input, shape index: {}]
  %s8 = inlined_call_operand.vmem [shape: f32[32,1], index: 8, kind: input, shape index: {}]
  %s9 = inlined_call_operand.vmem [shape: f32[2,32,256], index: 9, kind: output, shape index: {}]
  %s10 = sld [smem:[#allocation0]]
  $region65: #{mutual_attention_forward.1} parent=0
    _
  %s12 = ssub.s32 1, %s10
  %s13 = scalar_select 0, %s12, %s10
  %s14 = sshll.u32 %s0, 4
  %s15 = int_to_ptr.vmem [resolvable:$true] %s14
  %17 = dma.vmem_to_smem %s15, 16, [#allocation3], [#allocation2]
  %18 = dma.done [#allocation2], 16
  %19 = sfence
  loop: start=0, step=1, limit=4
  $region2: #{mutual_attention_forward.1} parent=0 // loop_pre_header
    _
  $region3: #{mutual_attention_forward.1} parent=0 // loop_header
    %s21 = sphi 0, %s25
    %p22 = scmp.ge.s32.totalorder %s21, 4
    %s31 = sphi 0, %s33
    %s34 = sphi 0, %s31
    %s35 = sphi 0, %s34
    %s51 = sphi 0, %s35
    %s57 = sphi 0, %s59
    %s60 = sphi 0, %s57
    %s61 = sphi 0, %s60
    %s77 = sphi 0, %s61
    %s81 = sphi 0, %s81
    %s83 = sphi 0, %s81
    %s84 = sphi 0, %s83
    %s98 = sphi 0, %s84
    %s102 = sphi 0, %s102
    %s104 = sphi 0, %s102
    %s105 = sphi 0, %s104
    %s119 = sphi 0, %s105
    %s123 = sphi 0, %s123
    %s125 = sphi 0, %s123
    %s126 = sphi 0, %s125
    %s140 = sphi 0, %s126
    %s144 = sphi 0, %s144
    %s146 = sphi 0, %s144
    %s147 = sphi 0, %s146
    %s161 = sphi 0, %s147
    %s165 = sphi 0, %s165
    %s167 = sphi 0, %s165
    %s168 = sphi 0, %s167
    %s182 = sphi 0, %s168
    %s186 = sphi 0, %s186
    %s188 = sphi 0, %s186
    %s189 = sphi 0, %s188
    %s203 = sphi 0, %s189
    %s209 = sphi 0, %s211
    %s212 = sphi 0, %s209
    %s213 = sphi 0, %s212
    %s229 = sphi 0, %s213
  $region4: #{mutual_attention_forward.1} parent=0 // loop_header_branch
    %24 = sbr.rel (%p22) target = $region8
  $region5: #{mutual_attention_forward.1} parent=0 // loop_body
    %s26 = ssub.s32 %s21, 1
    %s27 = ssub.s32 %s21, 2
    %s28 = sadd.s32 %s21, 1
    %s29 = ssub.s32 %s21, %s28
    %p30 = scmp.eq.s32.totalorder %s29, 0
    %s32 = sadd.s32 %s31, 1
    %s33 = scalar_select %p30, %s31, %s32
    %p36 = pneg %p30
    %p37 = scmp.eq.s32.totalorder %s21, 1
    %p38 = por %p36, %p37
    %p39 = scmp.ne.s32.totalorder %s31, %s34
    %p40 = scmp.eq.s32.totalorder %s21, 0
    %p41 = por %p39, %p40
    %p42 = scmp.ne.s32.totalorder %s31, %s34
    %p43 = scmp.eq.s32.totalorder %s26, 1
    %p44 = por %p42, %p43
    %p45 = scmp.ne.s32.totalorder %s34, %s35
    %p46 = scmp.eq.s32.totalorder %s26, 0
    %p47 = por %p45, %p46
    %p48 = scmp.ne.s32.totalorder %s34, %s35
    %p49 = scmp.eq.s32.totalorder %s27, 1
    %p50 = por %p48, %p49
    %p52 = scmp.ne.s32.totalorder %s35, %s51
    %p53 = scmp.eq.s32.totalorder %s27, 0
    %p54 = por %p52, %p53
    %s55 = ssub.s32 %s21, %s28
    %p56 = scmp.eq.s32.totalorder %s55, 0
    %s58 = sadd.s32 %s57, 1
    %s59 = scalar_select %p56, %s57, %s58
    %p62 = pneg %p56
    %p63 = scmp.eq.s32.totalorder %s21, 1
    %p64 = por %p62, %p63
    %p65 = scmp.ne.s32.totalorder %s57, %s60
    %p66 = scmp.eq.s32.totalorder %s21, 0
    %p67 = por %p65, %p66
    %p68 = scmp.ne.s32.totalorder %s57, %s60
    %p69 = scmp.eq.s32.totalorder %s26, 1
    %p70 = por %p68, %p69
    %p71 = scmp.ne.s32.totalorder %s60, %s61
    %p72 = scmp.eq.s32.totalorder %s26, 0
    %p73 = por %p71, %p72
    %p74 = scmp.ne.s32.totalorder %s60, %s61
    %p75 = scmp.eq.s32.totalorder %s27, 1
    %p76 = por %p74, %p75
    %p78 = scmp.ne.s32.totalorder %s61, %s77
    %p79 = scmp.eq.s32.totalorder %s27, 0
    %p80 = por %p78, %p79
    %s82 = sadd.s32 %s81, 1
    %p85 = scmp.eq.s32.totalorder %s21, 1
    %p86 = scmp.ne.s32.totalorder %s81, %s83
    %p87 = scmp.eq.s32.totalorder %s21, 0
    %p88 = por %p86, %p87
    %p89 = scmp.ne.s32.totalorder %s81, %s83
    %p90 = scmp.eq.s32.totalorder %s26, 1
    %p91 = por %p89, %p90
    %p92 = scmp.ne.s32.totalorder %s83, %s84
    %p93 = scmp.eq.s32.totalorder %s26, 0
    %p94 = por %p92, %p93
    %p95 = scmp.ne.s32.totalorder %s83, %s84
    %p96 = scmp.eq.s32.totalorder %s27, 1
    %p97 = por %p95, %p96
    %p99 = scmp.ne.s32.totalorder %s84, %s98
    %p100 = scmp.eq.s32.totalorder %s27, 0
    %p101 = por %p99, %p100
    %s103 = sadd.s32 %s102, 1
    %p106 = scmp.eq.s32.totalorder %s21, 1
    %p107 = scmp.ne.s32.totalorder %s102, %s104
    %p108 = scmp.eq.s32.totalorder %s21, 0
    %p109 = por %p107, %p108
    %p110 = scmp.ne.s32.totalorder %s102, %s104
    %p111 = scmp.eq.s32.totalorder %s26, 1
    %p112 = por %p110, %p111
    %p113 = scmp.ne.s32.totalorder %s104, %s105
    %p114 = scmp.eq.s32.totalorder %s26, 0
    %p115 = por %p113, %p114
    %p116 = scmp.ne.s32.totalorder %s104, %s105
    %p117 = scmp.eq.s32.totalorder %s27, 1
    %p118 = por %p116, %p117
    %p120 = scmp.ne.s32.totalorder %s105, %s119
    %p121 = scmp.eq.s32.totalorder %s27, 0
    %p122 = por %p120, %p121
    %s124 = sadd.s32 %s123, 1
    %p127 = scmp.eq.s32.totalorder %s21, 1
    %p128 = scmp.ne.s32.totalorder %s123, %s125
    %p129 = scmp.eq.s32.totalorder %s21, 0
    %p130 = por %p128, %p129
    %p131 = scmp.ne.s32.totalorder %s123, %s125
    %p132 = scmp.eq.s32.totalorder %s26, 1
    %p133 = por %p131, %p132
    %p134 = scmp.ne.s32.totalorder %s125, %s126
    %p135 = scmp.eq.s32.totalorder %s26, 0
    %p136 = por %p134, %p135
    %p137 = scmp.ne.s32.totalorder %s125, %s126
    %p138 = scmp.eq.s32.totalorder %s27, 1
    %p139 = por %p137, %p138
    %p141 = scmp.ne.s32.totalorder %s126, %s140
    %p142 = scmp.eq.s32.totalorder %s27, 0
    %p143 = por %p141, %p142
    %s145 = sadd.s32 %s144, 1
    %p148 = scmp.eq.s32.totalorder %s21, 1
    %p149 = scmp.ne.s32.totalorder %s144, %s146
    %p150 = scmp.eq.s32.totalorder %s21, 0
    %p151 = por %p149, %p150
    %p152 = scmp.ne.s32.totalorder %s144, %s146
    %p153 = scmp.eq.s32.totalorder %s26, 1
    %p154 = por %p152, %p153
    %p155 = scmp.ne.s32.totalorder %s146, %s147
    %p156 = scmp.eq.s32.totalorder %s26, 0
    %p157 = por %p155, %p156
    %p158 = scmp.ne.s32.totalorder %s146, %s147
    %p159 = scmp.eq.s32.totalorder %s27, 1
    %p160 = por %p158, %p159
    %p162 = scmp.ne.s32.totalorder %s147, %s161
    %p163 = scmp.eq.s32.totalorder %s27, 0
    %p164 = por %p162, %p163
    %s166 = sadd.s32 %s165, 1
    %p169 = scmp.eq.s32.totalorder %s21, 1
    %p170 = scmp.ne.s32.totalorder %s165, %s167
    %p171 = scmp.eq.s32.totalorder %s21, 0
    %p172 = por %p170, %p171
    %p173 = scmp.ne.s32.totalorder %s165, %s167
    %p174 = scmp.eq.s32.totalorder %s26, 1
    %p175 = por %p173, %p174
    %p176 = scmp.ne.s32.totalorder %s167, %s168
    %p177 = scmp.eq.s32.totalorder %s26, 0
    %p178 = por %p176, %p177
    %p179 = scmp.ne.s32.totalorder %s167, %s168
    %p180 = scmp.eq.s32.totalorder %s27, 1
    %p181 = por %p179, %p180
    %p183 = scmp.ne.s32.totalorder %s168, %s182
    %p184 = scmp.eq.s32.totalorder %s27, 0
    %p185 = por %p183, %p184
    %s187 = sadd.s32 %s186, 1
    %p190 = scmp.eq.s32.totalorder %s21, 1
    %p191 = scmp.ne.s32.totalorder %s186, %s188
    %p192 = scmp.eq.s32.totalorder %s21, 0
    %p193 = por %p191, %p192
    %p194 = scmp.ne.s32.totalorder %s186, %s188
    %p195 = scmp.eq.s32.totalorder %s26, 1
    %p196 = por %p194, %p195
    %p197 = scmp.ne.s32.totalorder %s188, %s189
    %p198 = scmp.eq.s32.totalorder %s26, 0
    %p199 = por %p197, %p198
    %p200 = scmp.ne.s32.totalorder %s188, %s189
    %p201 = scmp.eq.s32.totalorder %s27, 1
    %p202 = por %p200, %p201
    %p204 = scmp.ne.s32.totalorder %s189, %s203
    %p205 = scmp.eq.s32.totalorder %s27, 0
    %p206 = por %p204, %p205
    %s207 = ssub.s32 %s21, %s28
    %p208 = scmp.eq.s32.totalorder %s207, 0
    %s210 = sadd.s32 %s209, 1
    %s211 = scalar_select %p208, %s209, %s210
    %p214 = pneg %p208
    %p215 = scmp.eq.s32.totalorder %s21, 1
    %p216 = por %p214, %p215
    %p217 = scmp.ne.s32.totalorder %s209, %s212
    %p218 = scmp.eq.s32.totalorder %s21, 0
    %p219 = por %p217, %p218
    %p220 = scmp.ne.s32.totalorder %s209, %s212
    %p221 = scmp.eq.s32.totalorder %s26, 1
    %p222 = por %p220, %p221
    %p223 = scmp.ne.s32.totalorder %s212, %s213
    %p224 = scmp.eq.s32.totalorder %s26, 0
    %p225 = por %p223, %p224
    %p226 = scmp.ne.s32.totalorder %s212, %s213
    %p227 = scmp.eq.s32.totalorder %s27, 1
    %p228 = por %p226, %p227
    %p230 = scmp.ne.s32.totalorder %s213, %s229
    %p231 = scmp.eq.s32.totalorder %s27, 0
    %p232 = por %p230, %p231
    %p233 = scmp.le.s32.totalorder 1, %s21
    %p234 = scmp.lt.s32.totalorder %s21, 3
    %p235 = pnand %p233, %p234
    %p236 = pneg %p235
    // Predicated region
    $region9: #{mutual_attention_forward.1} parent=5 // pred_check
      _
    $region10: #{mutual_attention_forward.1} parent=5 // pred_check_branch
      %238 = sbr.rel (%p235) target = $region12
    $region11: #{mutual_attention_forward.1} parent=5 // pred_region
      %s239 = ssub.s32 %s21, 1
      // Predicated region
      $region13: #{mutual_attention_forward.1} parent=11 // pred_check
        %p240 = pneg %p94
      $region14: #{mutual_attention_forward.1} parent=11 // pred_check_branch
        %242 = sbr.rel (%p240) target = $region16
      $region15: #{mutual_attention_forward.1} parent=11 // pred_region
        _
      $region16: #{mutual_attention_forward.1} parent=11 // pred_fallthru
        _
      // Predicated region
      $region17: #{mutual_attention_forward.1} parent=11 // pred_check
        %p243 = pneg %p115
      $region18: #{mutual_attention_forward.1} parent=11 // pred_check_branch
        %245 = sbr.rel (%p243) target = $region20
      $region19: #{mutual_attention_forward.1} parent=11 // pred_region
        _
      $region20: #{mutual_attention_forward.1} parent=11 // pred_fallthru
        _
      // Predicated region
      $region21: #{mutual_attention_forward.1} parent=11 // pred_check
        %p246 = pneg %p136
      $region22: #{mutual_attention_forward.1} parent=11 // pred_check_branch
        %248 = sbr.rel (%p246) target = $region24
      $region23: #{mutual_attention_forward.1} parent=11 // pred_region
        _
      $region24: #{mutual_attention_forward.1} parent=11 // pred_fallthru
        _
      // Predicated region
      $region25: #{mutual_attention_forward.1} parent=11 // pred_check
        %p249 = pneg %p157
      $region26: #{mutual_attention_forward.1} parent=11 // pred_check_branch
        %251 = sbr.rel (%p249) target = $region28
      $region27: #{mutual_attention_forward.1} parent=11 // pred_region
        _
      $region28: #{mutual_attention_forward.1} parent=11 // pred_fallthru
        _
      // Predicated region
      $region29: #{mutual_attention_forward.1} parent=11 // pred_check
        %p252 = pneg %p178
      $region30: #{mutual_attention_forward.1} parent=11 // pred_check_branch
        %254 = sbr.rel (%p252) target = $region32
      $region31: #{mutual_attention_forward.1} parent=11 // pred_region
        _
      $region32: #{mutual_attention_forward.1} parent=11 // pred_fallthru
        _
      // Predicated region
      $region33: #{mutual_attention_forward.1} parent=11 // pred_check
        %p255 = pneg %p199
      $region34: #{mutual_attention_forward.1} parent=11 // pred_check_branch
        %257 = sbr.rel (%p255) target = $region36
      $region35: #{mutual_attention_forward.1} parent=11 // pred_region
        _
      $region36: #{mutual_attention_forward.1} parent=11 // pred_fallthru
        _
    $region12: #{mutual_attention_forward.1} parent=5 // pred_fallthru
      _
    %p258 = scmp.lt.s32.totalorder %s21, 2
    // Predicated region
    $region37: #{mutual_attention_forward.1} parent=5 // pred_check
      %p259 = pneg %p258
    $region38: #{mutual_attention_forward.1} parent=5 // pred_check_branch
      %261 = sbr.rel (%p259) target = $region40
    $region39: #{mutual_attention_forward.1} parent=5 // pred_region
      // Predicated region
      $region41: #{mutual_attention_forward.1} parent=39 // pred_check
        %p262 = pneg %p41
      $region42: #{mutual_attention_forward.1} parent=39 // pred_check_branch
        %264 = sbr.rel (%p262) target = $region44
      $region43: #{mutual_attention_forward.1} parent=39 // pred_region
        %p265 = scmp.lt.s32.totalorder %s21, 1
        %s266 = scalar_select %p265, %s21, 1
        %s267 = smul.addr %s266, 8
        %s268 = smul.addr %s267, 8
        %s269 = scalar_lea.vmem %s1, %s268
      $region44: #{mutual_attention_forward.1} parent=39 // pred_fallthru
        _
      // Predicated region
      $region45: #{mutual_attention_forward.1} parent=39 // pred_check
        %p270 = pneg %p67
      $region46: #{mutual_attention_forward.1} parent=39 // pred_check_branch
        %272 = sbr.rel (%p270) target = $region48
      $region47: #{mutual_attention_forward.1} parent=39 // pred_region
        %p273 = scmp.lt.s32.totalorder %s21, 1
        %s274 = scalar_select %p273, %s21, 1
        %s275 = smul.addr %s274, 8
        %s276 = smul.addr %s275, 8
        %s277 = scalar_lea.vmem %s2, %s276
      $region48: #{mutual_attention_forward.1} parent=39 // pred_fallthru
        _
    $region40: #{mutual_attention_forward.1} parent=5 // pred_fallthru
      _
    %p278 = scmp.le.s32.totalorder 1, %s21
    %p279 = scmp.lt.s32.totalorder %s21, 3
    %p280 = pnand %p278, %p279
    %p281 = pneg %p280
    // Predicated region
    $region49: #{mutual_attention_forward.1} parent=5 // pred_check
      _
    $region50: #{mutual_attention_forward.1} parent=5 // pred_check_branch
      %283 = sbr.rel (%p280) target = $region52
    $region51: #{mutual_attention_forward.1} parent=5 // pred_region
      %s284 = ssub.s32 %s21, 1
      %p285 = scmp.lt.s32.totalorder %s26, 1
      %s286 = scalar_select %p285, %s26, 1
      %s287 = smul.addr %s286, 8
      %s288 = smul.addr %s287, 8
      %s289 = scalar_lea.vmem %s1, %s288
      %p290 = pneg %p47
      %p291 = pneg %p44
      %p292 = scmp.lt.s32.totalorder %s26, 1
      %s293 = scalar_select %p292, %s26, 1
      %s294 = smul.addr %s293, 8
      %s295 = smul.addr %s294, 8
      %s296 = scalar_lea.vmem %s2, %s295
      %p297 = pneg %p73
      %p298 = pneg %p70
      %p299 = pneg %p94
      %p300 = pneg %p91
      %p301 = pneg %p115
      %p302 = pneg %p112
      %p303 = pneg %p136
      %p304 = pneg %p133
      %p305 = pneg %p157
      %p306 = pneg %p154
      %p307 = pneg %p178
      %p308 = pneg %p175
      %p309 = pneg %p199
      %p310 = pneg %p196
      %p311 = pneg %p225
      %p312 = pneg %p222
      %p313 = scmp.lt.s32.totalorder %s26, 1
      %s314 = scalar_select %p313, %s26, 1
      %s315 = smul.addr %s314, 8
      %s316 = smul.addr %s315, 8
      %s317 = scalar_lea.vmem %s9, %s316
      %p318 = scmp.lt.s32.totalorder %s26, 1
      %s319 = scalar_select %p318, %s26, 1
      %s320 = smul.addr %s319, 8
      %s321 = smul.addr %s320, 8
      %s322 = scalar_lea.vmem %s1, %s321
      %p323 = scmp.lt.s32.totalorder %s26, 1
      %s324 = scalar_select %p323, %s26, 1
      %s325 = smul.addr %s324, 8
      %s326 = smul.addr %s325, 8
      %s327 = scalar_lea.vmem %s2, %s326
      %p328 = scmp.lt.s32.totalorder %s26, 1
      %s329 = scalar_select %p328, %s26, 1
      %s330 = smul.addr %s329, 8
      %s331 = smul.addr %s330, 8
      %s332 = scalar_lea.vmem %s9, %s331
      %v333 = vld [vmem:[%s322] sm:$0xff]
      %v334 = vld [vmem:[%s322 + $0x8] sm:$0xff]
      %v335 = vld [vmem:[%s322 + $0x10] sm:$0xff]
      %v336 = vld [vmem:[%s322 + $0x18] sm:$0xff]
      %v337 = vld [vmem:[%s322 + $0x20] sm:$0xff]
      %v338 = vld [vmem:[%s322 + $0x28] sm:$0xff]
      %v339 = vld [vmem:[%s322 + $0x30] sm:$0xff]
      %v340 = vld [vmem:[%s322 + $0x38] sm:$0xff]
      %v341 = vld [vmem:[%s327] sm:$0xff]
      %v342 = vld [vmem:[%s327 + $0x8] sm:$0xff]
      %v343 = vld [vmem:[%s327 + $0x10] sm:$0xff]
      %v344 = vld [vmem:[%s327 + $0x18] sm:$0xff]
      %v345 = vld [vmem:[%s327 + $0x20] sm:$0xff]
      %v346 = vld [vmem:[%s327 + $0x28] sm:$0xff]
      %v347 = vld [vmem:[%s327 + $0x30] sm:$0xff]
      %v348 = vld [vmem:[%s327 + $0x38] sm:$0xff]
      %v349 = vld [vmem:[%s3] sm:$0xff]
      %v350 = vld [vmem:[%s3 + $0x8] sm:$0xff]
      %v351 = vld [vmem:[%s3 + $0x10] sm:$0xff]
      %v352 = vld [vmem:[%s3 + $0x18] sm:$0xff]
      %v353 = vld [vmem:[%s4] sm:$0xff]
      %v354 = vld [vmem:[%s4 + $0x8] sm:$0xff]
      %v355 = vld [vmem:[%s4 + $0x10] sm:$0xff]
      %v356 = vld [vmem:[%s4 + $0x18] sm:$0xff]
      %358 = vset.pattern.permute.xlu0 0
      %359 = vperm.xlu0 %358, %v353
      %v360 = vpop.permute.xlu0 %359
      %363 = vset.pattern.permute.xlu0 0
      %364 = vperm.xlu0 %363, %v354
      %v365 = vpop.permute.xlu0 %364
      %368 = vset.pattern.permute.xlu0 0
      %369 = vperm.xlu0 %368, %v355
      %v370 = vpop.permute.xlu0 %369
      %373 = vset.pattern.permute.xlu0 0
      %374 = vperm.xlu0 %373, %v356
      %v375 = vpop.permute.xlu0 %374
      %vm377 = vcmask 261120
      %v379 = vsel %vm377, %v349, 0
      %v382 = vsel %vm377, %v350, 0
      %v385 = vsel %vm377, %v351, 0
      %v388 = vsel %vm377, %v352, 0
      %390 = vmatprep.subr.mxu0 0.0
      %391 = vmatpush1.msra.mxu0 0.0
      %392 = vmatprep.subr.mxu0 0.0
      %393 = vmatpush1.msra.mxu0 0.0
      %394 = vmatprep.subr.mxu0 0.0
      %395 = vmatpush1.msra.mxu0 0.0
      %396 = vmatprep.subr.mxu0 0.0
      %397 = vmatpush1.msra.mxu0 0.0
      %398 = vmatprep.subr.mxu0 0.0
      %399 = vmatpush1.msra.mxu0 0.0
      %400 = vmatprep.subr.mxu0 0.0
      %401 = vmatpush1.msra.mxu0 0.0
      %402 = vmatprep.subr.mxu0 0.0
      %403 = vmatpush1.msra.mxu0 0.0
      %404 = vmatprep.subr.mxu0 0.0
      %405 = vmatpush1.msra.mxu0 0.0
      %406 = vmatprep.subr.mxu0 0.0
      %407 = vmatpush1.msra.mxu0 0.0
      %408 = vmatprep.subr.mxu0 0.0
      %409 = vmatpush1.msra.mxu0 0.0
      %410 = vmatprep.subr.mxu0 0.0
      %411 = vmatpush1.msra.mxu0 0.0
      %412 = vmatprep.subr.mxu0 0.0
      %413 = vmatpush1.msra.mxu0 0.0
      %414 = vmatprep.subr.mxu0 %v340
      %415 = vmatpush1.msra.mxu0 %v339
      %416 = vmatprep.subr.mxu0 %v338
      %417 = vmatpush1.msra.mxu0 %v337
      %418 = vmatprep.subr.mxu0 %v336
      %419 = vmatpush1.msra.mxu0 %v335
      %420 = vmatprep.subr.mxu0 %v334
      %421 = vmatpush1.msra.mxu0 %v333
      %422 = vmatprep.subr.mxu0 0.0
      %423 = vmatpush2.msra.mxu0 0.0
      %424 = vmatprep.subr.mxu0 0.0
      %425 = vmatpush2.msra.mxu0 0.0
      %426 = vmatprep.subr.mxu0 0.0
      %427 = vmatpush2.msra.mxu0 0.0
      %428 = vmatprep.subr.mxu0 0.0
      %429 = vmatpush2.msra.mxu0 0.0
      %430 = vmatprep.subr.mxu0 0.0
      %431 = vmatpush2.msra.mxu0 0.0
      %432 = vmatprep.subr.mxu0 0.0
      %433 = vmatpush2.msra.mxu0 0.0
      %434 = vmatprep.subr.mxu0 0.0
      %435 = vmatpush2.msra.mxu0 0.0
      %436 = vmatprep.subr.mxu0 0.0
      %437 = vmatpush2.msra.mxu0 0.0
      %438 = vmatprep.subr.mxu0 0.0
      %439 = vmatpush2.msra.mxu0 0.0
      %440 = vmatprep.subr.mxu0 0.0
      %441 = vmatpush2.msra.mxu0 0.0
      %442 = vmatprep.subr.mxu0 0.0
      %443 = vmatpush2.msra.mxu0 0.0
      %444 = vmatprep.subr.mxu0 0.0
      %445 = vmatpush2.msra.mxu0 0.0
      %446 = vmatprep.subr.mxu0 0.0
      %447 = vmatpush2.msra.mxu0 0.0
      %448 = vmatprep.subr.mxu0 0.0
      %449 = vmatpush2.msra.mxu0 0.0
      %450 = vmatprep.subr.mxu0 0.0
      %451 = vmatpush2.msra.mxu0 0.0
      %452 = vmatprep.subr.mxu0 0.0
      %453 = vmatpush2.msra.mxu0 0.0
      %454 = vmatprep.mubr.f32.mxu0 0.0
      %455 = vmatmul.mubr.f32.gmra.mxu0 %v379
      %v456 = vpop.f32.mrf.mxu0
      %v457 = vadd.f32 %v360, %v456
      %v458 = vpop.f32.mrf.mxu0
      %v459 = vadd.f32 %v360, %v458
      %460 = vmatprep.mubr.f32.mxu0 0.0
      %461 = vmatmul.mubr.f32.gmra.mxu0 %v382
      %v462 = vpop.f32.mrf.mxu0
      %v463 = vadd.f32 %v365, %v462
      %v464 = vpop.f32.mrf.mxu0
      %v465 = vadd.f32 %v365, %v464
      %466 = vmatprep.mubr.f32.mxu0 0.0
      %467 = vmatmul.mubr.f32.gmra.mxu0 %v385
      %v468 = vpop.f32.mrf.mxu0
      %v469 = vadd.f32 %v370, %v468
      %v470 = vpop.f32.mrf.mxu0
      %v471 = vadd.f32 %v370, %v470
      %472 = vmatprep.mubr.f32.mxu0 0.0
      %473 = vmatmul.mubr.f32.gmra.mxu0 %v388
      %v474 = vpop.f32.mrf.mxu0
      %v475 = vadd.f32 %v375, %v474
      %v476 = vpop.f32.mrf.mxu0
      %v477 = vadd.f32 %v375, %v476
      %478 = vdwg.mxu0
      %v479 = vld [vmem:[%s5] sm:$0xff]
      %v480 = vld [vmem:[%s5 + $0x8] sm:$0xff]
      %v481 = vld [vmem:[%s5 + $0x10] sm:$0xff]
      %v482 = vld [vmem:[%s5 + $0x18] sm:$0xff]
      %v483 = vld [vmem:[%s5 + $0x20] sm:$0xff]
      %v484 = vld [vmem:[%s5 + $0x28] sm:$0xff]
      %v485 = vld [vmem:[%s5 + $0x30] sm:$0xff]
      %v486 = vld [vmem:[%s5 + $0x38] sm:$0xff]
      %v487 = vld [vmem:[%s6] sm:$0xff]
      %v488 = vld [vmem:[%s6 + $0x8] sm:$0xff]
      %v489 = vld [vmem:[%s6 + $0x10] sm:$0xff]
      %v490 = vld [vmem:[%s6 + $0x18] sm:$0xff]
      %v491 = vld [vmem:[%s6 + $0x20] sm:$0xff]
      %v492 = vld [vmem:[%s6 + $0x28] sm:$0xff]
      %v493 = vld [vmem:[%s6 + $0x30] sm:$0xff]
      %v494 = vld [vmem:[%s6 + $0x38] sm:$0xff]
      %496 = vset.pattern.permute.xlu0 0
      %497 = vperm.xlu0 %496, %v487
      %v498 = vpop.permute.xlu0 %497
      %501 = vset.pattern.permute.xlu0 0
      %502 = vperm.xlu0 %501, %v488
      %v503 = vpop.permute.xlu0 %502
      %506 = vset.pattern.permute.xlu0 0
      %507 = vperm.xlu0 %506, %v489
      %v508 = vpop.permute.xlu0 %507
      %511 = vset.pattern.permute.xlu0 0
      %512 = vperm.xlu0 %511, %v490
      %v513 = vpop.permute.xlu0 %512
      %516 = vset.pattern.permute.xlu0 0
      %517 = vperm.xlu0 %516, %v491
      %v518 = vpop.permute.xlu0 %517
      %521 = vset.pattern.permute.xlu0 0
      %522 = vperm.xlu0 %521, %v492
      %v523 = vpop.permute.xlu0 %522
      %526 = vset.pattern.permute.xlu0 0
      %527 = vperm.xlu0 %526, %v493
      %v528 = vpop.permute.xlu0 %527
      %531 = vset.pattern.permute.xlu0 0
      %532 = vperm.xlu0 %531, %v494
      %v533 = vpop.permute.xlu0 %532
      %v536 = vsel %vm377, %v479, 0
      %v539 = vsel %vm377, %v480, 0
      %v542 = vsel %vm377, %v481, 0
      %v545 = vsel %vm377, %v482, 0
      %v548 = vsel %vm377, %v483, 0
      %v551 = vsel %vm377, %v484, 0
      %v554 = vsel %vm377, %v485, 0
      %v557 = vsel %vm377, %v486, 0
      %559 = vmatprep.subr.mxu0 0.0
      %560 = vmatpush1.msra.mxu0 0.0
      %561 = vmatprep.subr.mxu0 0.0
      %562 = vmatpush1.msra.mxu0 0.0
      %563 = vmatprep.subr.mxu0 0.0
      %564 = vmatpush1.msra.mxu0 0.0
      %565 = vmatprep.subr.mxu0 0.0
      %566 = vmatpush1.msra.mxu0 0.0
      %567 = vmatprep.subr.mxu0 0.0
      %568 = vmatpush1.msra.mxu0 0.0
      %569 = vmatprep.subr.mxu0 0.0
      %570 = vmatpush1.msra.mxu0 0.0
      %571 = vmatprep.subr.mxu0 0.0
      %572 = vmatpush1.msra.mxu0 0.0
      %573 = vmatprep.subr.mxu0 0.0
      %574 = vmatpush1.msra.mxu0 0.0
      %575 = vmatprep.subr.mxu0 0.0
      %576 = vmatpush1.msra.mxu0 0.0
      %577 = vmatprep.subr.mxu0 0.0
      %578 = vmatpush1.msra.mxu0 0.0
      %579 = vmatprep.subr.mxu0 0.0
      %580 = vmatpush1.msra.mxu0 0.0
      %581 = vmatprep.subr.mxu0 0.0
      %582 = vmatpush1.msra.mxu0 0.0
      %583 = vmatprep.subr.mxu0 %v348
      %584 = vmatpush1.msra.mxu0 %v347
      %585 = vmatprep.subr.mxu0 %v346
      %586 = vmatpush1.msra.mxu0 %v345
      %587 = vmatprep.subr.mxu0 %v344
      %588 = vmatpush1.msra.mxu0 %v343
      %589 = vmatprep.subr.mxu0 %v342
      %590 = vmatpush1.msra.mxu0 %v341
      %591 = vmatprep.subr.mxu0 0.0
      %592 = vmatpush2.msra.mxu0 0.0
      %593 = vmatprep.subr.mxu0 0.0
      %594 = vmatpush2.msra.mxu0 0.0
      %595 = vmatprep.subr.mxu0 0.0
      %596 = vmatpush2.msra.mxu0 0.0
      %597 = vmatprep.subr.mxu0 0.0
      %598 = vmatpush2.msra.mxu0 0.0
      %599 = vmatprep.subr.mxu0 0.0
      %600 = vmatpush2.msra.mxu0 0.0
      %601 = vmatprep.subr.mxu0 0.0
      %602 = vmatpush2.msra.mxu0 0.0
      %603 = vmatprep.subr.mxu0 0.0
      %604 = vmatpush2.msra.mxu0 0.0
      %605 = vmatprep.subr.mxu0 0.0
      %606 = vmatpush2.msra.mxu0 0.0
      %607 = vmatprep.subr.mxu0 0.0
      %608 = vmatpush2.msra.mxu0 0.0
      %609 = vmatprep.subr.mxu0 0.0
      %610 = vmatpush2.msra.mxu0 0.0
      %611 = vmatprep.subr.mxu0 0.0
      %612 = vmatpush2.msra.mxu0 0.0
      %613 = vmatprep.subr.mxu0 0.0
      %614 = vmatpush2.msra.mxu0 0.0
      %615 = vmatprep.subr.mxu0 0.0
      %616 = vmatpush2.msra.mxu0 0.0
      %617 = vmatprep.subr.mxu0 0.0
      %618 = vmatpush2.msra.mxu0 0.0
      %619 = vmatprep.subr.mxu0 0.0
      %620 = vmatpush2.msra.mxu0 0.0
      %621 = vmatprep.subr.mxu0 0.0
      %622 = vmatpush2.msra.mxu0 0.0
      %623 = vmatprep.mubr.f32.mxu0 0.0
      %624 = vmatmul.mubr.f32.gmra.mxu0 %v536
      %v625 = vpop.f32.mrf.mxu0
      %v626 = vadd.f32 %v498, %v625
      %v627 = vpop.f32.mrf.mxu0
      %v628 = vadd.f32 %v498, %v627
      %629 = vmatprep.mubr.f32.mxu0 0.0
      %630 = vmatmul.mubr.f32.gmra.mxu0 %v539
      %v631 = vpop.f32.mrf.mxu0
      %v632 = vadd.f32 %v503, %v631
      %v633 = vpop.f32.mrf.mxu0
      %v634 = vadd.f32 %v503, %v633
      %635 = vmatprep.mubr.f32.mxu0 0.0
      %636 = vmatmul.mubr.f32.gmra.mxu0 %v542
      %v637 = vpop.f32.mrf.mxu0
      %v638 = vadd.f32 %v508, %v637
      %v639 = vpop.f32.mrf.mxu0
      %v640 = vadd.f32 %v508, %v639
      %641 = vmatprep.mubr.f32.mxu0 0.0
      %642 = vmatmul.mubr.f32.gmra.mxu0 %v545
      %v643 = vpop.f32.mrf.mxu0
      %v644 = vadd.f32 %v513, %v643
      %v645 = vpop.f32.mrf.mxu0
      %v646 = vadd.f32 %v513, %v645
      %647 = vmatprep.mubr.f32.mxu0 0.0
      %648 = vmatmul.mubr.f32.gmra.mxu0 %v548
      %v649 = vpop.f32.mrf.mxu0
      %v650 = vadd.f32 %v518, %v649
      %v651 = vpop.f32.mrf.mxu0
      %v652 = vadd.f32 %v518, %v651
      %653 = vmatprep.mubr.f32.mxu0 0.0
      %654 = vmatmul.mubr.f32.gmra.mxu0 %v551
      %v655 = vpop.f32.mrf.mxu0
      %v656 = vadd.f32 %v523, %v655
      %v657 = vpop.f32.mrf.mxu0
      %v658 = vadd.f32 %v523, %v657
      %659 = vmatprep.mubr.f32.mxu0 0.0
      %660 = vmatmul.mubr.f32.gmra.mxu0 %v554
      %v661 = vpop.f32.mrf.mxu0
      %v662 = vadd.f32 %v528, %v661
      %v663 = vpop.f32.mrf.mxu0
      %v664 = vadd.f32 %v528, %v663
      %665 = vmatprep.mubr.f32.mxu0 0.0
      %666 = vmatmul.mubr.f32.gmra.mxu0 %v557
      %v667 = vpop.f32.mrf.mxu0
      %v668 = vadd.f32 %v533, %v667
      %v669 = vpop.f32.mrf.mxu0
      %v670 = vadd.f32 %v533, %v669
      %671 = vdwg.mxu0
      %v672 = vmul.f32 %v457, %v457
      %v673 = vmul.f32 %v459, %v459
      %v674 = vmul.f32 %v463, %v463
      %v675 = vmul.f32 %v465, %v465
      %v676 = vmul.f32 %v469, %v469
      %v677 = vmul.f32 %v471, %v471
      %v678 = vmul.f32 %v475, %v475
      %v679 = vmul.f32 %v477, %v477
      %v680 = vadd.f32 %v672, %v673
      %681 = vadd.xlane.f32.xlu0 %v680
      %v682 = vpop.xlane.xlu0 %681
      %v683 = vadd.f32 %v674, %v675
      %684 = vadd.xlane.f32.xlu0 %v683
      %v685 = vpop.xlane.xlu0 %684
      %v686 = vadd.f32 %v676, %v677
      %687 = vadd.xlane.f32.xlu0 %v686
      %v688 = vpop.xlane.xlu0 %687
      %v689 = vadd.f32 %v678, %v679
      %690 = vadd.xlane.f32.xlu0 %v689
      %v691 = vpop.xlane.xlu0 %690
      %v692 = vmul.f32 %v626, %v626
      %v693 = vmul.f32 %v628, %v628
      %v694 = vmul.f32 %v632, %v632
      %v695 = vmul.f32 %v634, %v634
      %v696 = vmul.f32 %v638, %v638
      %v697 = vmul.f32 %v640, %v640
      %v698 = vmul.f32 %v644, %v644
      %v699 = vmul.f32 %v646, %v646
      %v700 = vadd.f32 %v692, %v693
      %701 = vadd.xlane.f32.xlu0 %v700
      %v702 = vpop.xlane.xlu0 %701
      %v703 = vadd.f32 %v694, %v695
      %704 = vadd.xlane.f32.xlu0 %v703
      %v705 = vpop.xlane.xlu0 %704
      %v706 = vadd.f32 %v696, %v697
      %707 = vadd.xlane.f32.xlu0 %v706
      %v708 = vpop.xlane.xlu0 %707
      %v709 = vadd.f32 %v698, %v699
      %710 = vadd.xlane.f32.xlu0 %v709
      %v711 = vpop.xlane.xlu0 %710
      %v712 = vlaneseq
      %v713 = vshrl.u32 %v712, 7
      %v714 = vadd.s32 %v713, 8
      %v715 = vadd.s32 %v713, 16
      %v716 = vadd.s32 %v713, 24
      %vm717 = vcmp.ge.s32.totalorder %v713, 0
      %vm718 = vcmp.ge.s32.totalorder %v714, 0
      %vm719 = vcmp.ge.s32.totalorder %v715, 0
      %vm720 = vcmp.ge.s32.totalorder %v716, 0
      %vm721 = vcmp.lt.s32.totalorder %v713, 8
      %vm722 = vcmp.lt.s32.totalorder %v714, 8
      %vm723 = vcmp.lt.s32.totalorder %v715, 8
      %vm724 = vcmp.lt.s32.totalorder %v716, 8
      %vm725 = vmand %vm717, %vm721
      %vm726 = vmand %vm718, %vm722
      %vm727 = vmand %vm719, %vm723
      %vm728 = vmand %vm720, %vm724
      %s729 = sld [smem:[#allocation3]]
      %v730 = vstv %s729
      %v731 = vsel %vm725, %v730, 0.0
      %v732 = vsel %vm726, %v730, 0.0
      %v733 = vsel %vm727, %v730, 0.0
      %v734 = vsel %vm728, %v730, 0.0
      %vm735 = vcmp.ge.s32.totalorder %v713, 8
      %vm736 = vcmp.ge.s32.totalorder %v714, 8
      %vm737 = vcmp.ge.s32.totalorder %v715, 8
      %vm738 = vcmp.ge.s32.totalorder %v716, 8
      %vm739 = vcmp.lt.s32.totalorder %v713, 16
      %vm740 = vcmp.lt.s32.totalorder %v714, 16
      %vm741 = vcmp.lt.s32.totalorder %v715, 16
      %vm742 = vcmp.lt.s32.totalorder %v716, 16
      %vm743 = vmand %vm735, %vm739
      %vm744 = vmand %vm736, %vm740
      %vm745 = vmand %vm737, %vm741
      %vm746 = vmand %vm738, %vm742
      %s747 = sld [smem:[#allocation3 + $0x1]]
      %v748 = vstv %s747
      %v749 = vsel %vm743, %v748, %v731
      %v750 = vsel %vm744, %v748, %v732
      %v751 = vsel %vm745, %v748, %v733
      %v752 = vsel %vm746, %v748, %v734
      %vm753 = vcmp.ge.s32.totalorder %v713, 16
      %vm754 = vcmp.ge.s32.totalorder %v714, 16
      %vm755 = vcmp.ge.s32.totalorder %v715, 16
      %vm756 = vcmp.ge.s32.totalorder %v716, 16
      %vm757 = vcmp.lt.s32.totalorder %v713, 24
      %vm758 = vcmp.lt.s32.totalorder %v714, 24
      %vm759 = vcmp.lt.s32.totalorder %v715, 24
      %vm760 = vcmp.lt.s32.totalorder %v716, 24
      %vm761 = vmand %vm753, %vm757
      %vm762 = vmand %vm754, %vm758
      %vm763 = vmand %vm755, %vm759
      %vm764 = vmand %vm756, %vm760
      %s765 = sld [smem:[#allocation3 + $0x2]]
      %v766 = vstv %s765
      %v767 = vsel %vm761, %v766, %v749
      %v768 = vsel %vm762, %v766, %v750
      %v769 = vsel %vm763, %v766, %v751
      %v770 = vsel %vm764, %v766, %v752
      %vm771 = vcmp.ge.s32.totalorder %v713, 24
      %vm772 = vcmp.ge.s32.totalorder %v714, 24
      %vm773 = vcmp.ge.s32.totalorder %v715, 24
      %vm774 = vcmp.ge.s32.totalorder %v716, 24
      %vm775 = vcmp.lt.s32.totalorder %v713, 32
      %vm776 = vcmp.lt.s32.totalorder %v714, 32
      %vm777 = vcmp.lt.s32.totalorder %v715, 32
      %vm778 = vcmp.lt.s32.totalorder %v716, 32
      %vm779 = vmand %vm771, %vm775
      %vm780 = vmand %vm772, %vm776
      %vm781 = vmand %vm773, %vm777
      %vm782 = vmand %vm774, %vm778
      %s783 = sld [smem:[#allocation3 + $0x3]]
      %v784 = vstv %s783
      %v785 = vsel %vm779, %v784, %v767
      %v786 = vsel %vm780, %v784, %v768
      %v787 = vsel %vm781, %v784, %v769
      %v788 = vsel %vm782, %v784, %v770
      %v789 = vmax.f32 %v682, 1e-24
      %v790 = vmax.f32 %v685, 1e-24
      %v791 = vmax.f32 %v688, 1e-24
      %v792 = vmax.f32 %v691, 1e-24
      %v793 = vrsqrt.pop %v789
      %v794 = vrsqrt.pop %v790
      %v795 = vrsqrt.pop %v791
      %v796 = vrsqrt.pop %v792
      %v797 = vmul.f32 %v785, %v793
      %v798 = vmul.f32 %v786, %v794
      %v799 = vmul.f32 %v787, %v795
      %v800 = vmul.f32 %v788, %v796
      %v801 = vmax.f32 %v702, 1e-24
      %v802 = vmax.f32 %v705, 1e-24
      %v803 = vmax.f32 %v708, 1e-24
      %v804 = vmax.f32 %v711, 1e-24
      %v805 = vrsqrt.pop %v801
      %v806 = vrsqrt.pop %v802
      %v807 = vrsqrt.pop %v803
      %v808 = vrsqrt.pop %v804
      %vm809 = vcmask 7168
      %v811 = vsel %vm809, %v797, 0
      %v814 = vsel %vm809, %v798, 0
      %v817 = vsel %vm809, %v799, 0
      %v820 = vsel %vm809, %v800, 0
      %v823 = vsel %vm809, %v805, 0
      %v826 = vsel %vm809, %v806, 0
      %v829 = vsel %vm809, %v807, 0
      %v832 = vsel %vm809, %v808, 0
      %834 = vmatprep.subr.mxu0 0.0
      %835 = vmatpush1.xpose.msra.mxu0 0.0
      %836 = vmatprep.subr.mxu0 0.0
      %837 = vmatpush1.xpose.msra.mxu0 0.0
      %838 = vmatprep.subr.mxu0 0.0
      %839 = vmatpush1.xpose.msra.mxu0 0.0
      %840 = vmatprep.subr.mxu0 0.0
      %841 = vmatpush1.xpose.msra.mxu0 0.0
      %842 = vmatprep.subr.mxu0 0.0
      %843 = vmatpush1.xpose.msra.mxu0 0.0
      %844 = vmatprep.subr.mxu0 0.0
      %845 = vmatpush1.xpose.msra.mxu0 0.0
      %846 = vmatprep.subr.mxu0 0.0
      %847 = vmatpush1.xpose.msra.mxu0 0.0
      %848 = vmatprep.subr.mxu0 0.0
      %849 = vmatpush1.xpose.msra.mxu0 0.0
      %850 = vmatprep.subr.mxu0 0.0
      %851 = vmatpush1.xpose.msra.mxu0 0.0
      %852 = vmatprep.subr.mxu0 0.0
      %853 = vmatpush1.xpose.msra.mxu0 0.0
      %854 = vmatprep.subr.mxu0 0.0
      %855 = vmatpush1.xpose.msra.mxu0 0.0
      %856 = vmatprep.subr.mxu0 0.0
      %857 = vmatpush1.xpose.msra.mxu0 0.0
      %858 = vmatprep.subr.mxu0 0.0
      %859 = vmatpush1.xpose.msra.mxu0 %v832
      %860 = vmatprep.subr.mxu0 0.0
      %861 = vmatpush1.xpose.msra.mxu0 %v829
      %862 = vmatprep.subr.mxu0 0.0
      %863 = vmatpush1.xpose.msra.mxu0 %v826
      %864 = vmatprep.subr.mxu0 0.0
      %865 = vmatpush1.xpose.msra.mxu0 %v823
      %866 = vmatprep.subr.mxu0 0.0
      %867 = vmatpush2.xpose.msra.mxu0 0.0
      %868 = vmatprep.subr.mxu0 0.0
      %869 = vmatpush2.xpose.msra.mxu0 0.0
      %870 = vmatprep.subr.mxu0 0.0
      %871 = vmatpush2.xpose.msra.mxu0 0.0
      %872 = vmatprep.subr.mxu0 0.0
      %873 = vmatpush2.xpose.msra.mxu0 0.0
      %874 = vmatprep.subr.mxu0 0.0
      %875 = vmatpush2.xpose.msra.mxu0 0.0
      %876 = vmatprep.subr.mxu0 0.0
      %877 = vmatpush2.xpose.msra.mxu0 0.0
      %878 = vmatprep.subr.mxu0 0.0
      %879 = vmatpush2.xpose.msra.mxu0 0.0
      %880 = vmatprep.subr.mxu0 0.0
      %881 = vmatpush2.xpose.msra.mxu0 0.0
      %882 = vmatprep.subr.mxu0 0.0
      %883 = vmatpush2.xpose.msra.mxu0 0.0
      %884 = vmatprep.subr.mxu0 0.0
      %885 = vmatpush2.xpose.msra.mxu0 0.0
      %886 = vmatprep.subr.mxu0 0.0
      %887 = vmatpush2.xpose.msra.mxu0 0.0
      %888 = vmatprep.subr.mxu0 0.0
      %889 = vmatpush2.xpose.msra.mxu0 0.0
      %890 = vmatprep.subr.mxu0 0.0
      %891 = vmatpush2.xpose.msra.mxu0 0.0
      %892 = vmatprep.subr.mxu0 0.0
      %893 = vmatpush2.xpose.msra.mxu0 0.0
      %894 = vmatprep.subr.mxu0 0.0
      %895 = vmatpush2.xpose.msra.mxu0 0.0
      %896 = vmatprep.subr.mxu0 0.0
      %897 = vmatpush2.xpose.msra.mxu0 0.0
      %898 = vmatprep.mubr.f32.mxu0 0.0
      %899 = vmatmul.mubr.f32.gmra.mxu0 %v811
      %v900 = vpop.f32.mrf.mxu0
      %v901 = vadd.f32 0.0, %v900
      %v902 = vpop.f32.mrf.mxu0
      %903 = vmatprep.mubr.f32.mxu0 0.0
      %904 = vmatmul.mubr.f32.gmra.mxu0 %v814
      %v905 = vpop.f32.mrf.mxu0
      %v906 = vadd.f32 0.0, %v905
      %v907 = vpop.f32.mrf.mxu0
      %908 = vmatprep.mubr.f32.mxu0 0.0
      %909 = vmatmul.mubr.f32.gmra.mxu0 %v817
      %v910 = vpop.f32.mrf.mxu0
      %v911 = vadd.f32 0.0, %v910
      %v912 = vpop.f32.mrf.mxu0
      %913 = vmatprep.mubr.f32.mxu0 0.0
      %914 = vmatmul.mubr.f32.gmra.mxu0 %v820
      %v915 = vpop.f32.mrf.mxu0
      %v916 = vadd.f32 0.0, %v915
      %v917 = vpop.f32.mrf.mxu0
      %918 = vdwg.mxu0
      %919 = vmatprep.subr.mxu0 0.0
      %920 = vmatpush1.xpose.msra.mxu0 0.0
      %921 = vmatprep.subr.mxu0 0.0
      %922 = vmatpush1.xpose.msra.mxu0 0.0
      %923 = vmatprep.subr.mxu0 0.0
      %924 = vmatpush1.xpose.msra.mxu0 0.0
      %925 = vmatprep.subr.mxu0 0.0
      %926 = vmatpush1.xpose.msra.mxu0 0.0
      %927 = vmatprep.subr.mxu0 0.0
      %928 = vmatpush1.xpose.msra.mxu0 0.0
      %929 = vmatprep.subr.mxu0 0.0
      %930 = vmatpush1.xpose.msra.mxu0 0.0
      %931 = vmatprep.subr.mxu0 0.0
      %932 = vmatpush1.xpose.msra.mxu0 0.0
      %933 = vmatprep.subr.mxu0 0.0
      %934 = vmatpush1.xpose.msra.mxu0 0.0
      %935 = vmatprep.subr.mxu0 0.0
      %936 = vmatpush1.xpose.msra.mxu0 0.0
      %937 = vmatprep.subr.mxu0 0.0
      %938 = vmatpush1.xpose.msra.mxu0 0.0
      %939 = vmatprep.subr.mxu0 0.0
      %940 = vmatpush1.xpose.msra.mxu0 0.0
      %941 = vmatprep.subr.mxu0 0.0
      %942 = vmatpush1.xpose.msra.mxu0 0.0
      %943 = vmatprep.subr.mxu0 %v646
      %944 = vmatpush1.xpose.msra.mxu0 %v644
      %945 = vmatprep.subr.mxu0 %v640
      %946 = vmatpush1.xpose.msra.mxu0 %v638
      %947 = vmatprep.subr.mxu0 %v634
      %948 = vmatpush1.xpose.msra.mxu0 %v632
      %949 = vmatprep.subr.mxu0 %v628
      %950 = vmatpush1.xpose.msra.mxu0 %v626
      %951 = vmatprep.subr.mxu0 0.0
      %952 = vmatpush2.xpose.msra.mxu0 0.0
      %953 = vmatprep.subr.mxu0 0.0
      %954 = vmatpush2.xpose.msra.mxu0 0.0
      %955 = vmatprep.subr.mxu0 0.0
      %956 = vmatpush2.xpose.msra.mxu0 0.0
      %957 = vmatprep.subr.mxu0 0.0
      %958 = vmatpush2.xpose.msra.mxu0 0.0
      %959 = vmatprep.subr.mxu0 0.0
      %960 = vmatpush2.xpose.msra.mxu0 0.0
      %961 = vmatprep.subr.mxu0 0.0
      %962 = vmatpush2.xpose.msra.mxu0 0.0
      %963 = vmatprep.subr.mxu0 0.0
      %964 = vmatpush2.xpose.msra.mxu0 0.0
      %965 = vmatprep.subr.mxu0 0.0
      %966 = vmatpush2.xpose.msra.mxu0 0.0
      %967 = vmatprep.subr.mxu0 0.0
      %968 = vmatpush2.xpose.msra.mxu0 0.0
      %969 = vmatprep.subr.mxu0 0.0
      %970 = vmatpush2.xpose.msra.mxu0 0.0
      %971 = vmatprep.subr.mxu0 0.0
      %972 = vmatpush2.xpose.msra.mxu0 0.0
      %973 = vmatprep.subr.mxu0 0.0
      %974 = vmatpush2.xpose.msra.mxu0 0.0
      %975 = vmatprep.subr.mxu0 0.0
      %976 = vmatpush2.xpose.msra.mxu0 0.0
      %977 = vmatprep.subr.mxu0 0.0
      %978 = vmatpush2.xpose.msra.mxu0 0.0
      %979 = vmatprep.subr.mxu0 0.0
      %980 = vmatpush2.xpose.msra.mxu0 0.0
      %981 = vmatprep.subr.mxu0 0.0
      %982 = vmatpush2.xpose.msra.mxu0 0.0
      %983 = vmatprep.mubr.f32.mxu0 %v459
      %984 = vmatmul.mubr.f32.gmra.mxu0 %v457
      %v985 = vpop.f32.mrf.mxu0
      %v986 = vadd.f32 0.0, %v985
      %v987 = vpop.f32.mrf.mxu0
      %988 = vmatprep.mubr.f32.mxu0 %v465
      %989 = vmatmul.mubr.f32.gmra.mxu0 %v463
      %v990 = vpop.f32.mrf.mxu0
      %v991 = vadd.f32 0.0, %v990
      %v992 = vpop.f32.mrf.mxu0
      %993 = vmatprep.mubr.f32.mxu0 %v471
      %994 = vmatmul.mubr.f32.gmra.mxu0 %v469
      %v995 = vpop.f32.mrf.mxu0
      %v996 = vadd.f32 0.0, %v995
      %v997 = vpop.f32.mrf.mxu0
      %998 = vmatprep.mubr.f32.mxu0 %v477
      %999 = vmatmul.mubr.f32.gmra.mxu0 %v475
      %v1000 = vpop.f32.mrf.mxu0
      %v1001 = vadd.f32 0.0, %v1000
      %v1002 = vpop.f32.mrf.mxu0
      %1003 = vdwg.mxu0
      %v1004 = vmul.f32 %v986, %v901
      %v1005 = vmul.f32 %v991, %v906
      %v1006 = vmul.f32 %v996, %v911
      %v1007 = vmul.f32 %v1001, %v916
      %v1008 = vlaneseq
      %v1009 = vand.u32 %v1008, 127
      %vm1010 = vcmp.ge.s32.totalorder %v1009, 0
      %vm1011 = vcmp.lt.s32.totalorder %v1009, 8
      %vm1012 = vmand %vm1010, %vm1011
      %vm1013 = vmand %vm725, %vm1012
      %vm1014 = vmand %vm726, %vm1012
      %vm1015 = vmand %vm727, %vm1012
      %vm1016 = vmand %vm728, %vm1012
      %vm1017 = vcmp.ge.s32.totalorder %v1009, 8
      %vm1018 = vcmp.lt.s32.totalorder %v1009, 16
      %vm1019 = vmand %vm1017, %vm1018
      %vm1020 = vmand %vm743, %vm1019
      %vm1021 = vmand %vm744, %vm1019
      %vm1022 = vmand %vm745, %vm1019
      %vm1023 = vmand %vm746, %vm1019
      %vm1024 = vmor %vm1013, %vm1020
      %vm1025 = vmor %vm1014, %vm1021
      %vm1026 = vmor %vm1015, %vm1022
      %vm1027 = vmor %vm1016, %vm1023
      %vm1028 = vcmp.ge.s32.totalorder %v1009, 16
      %vm1029 = vcmp.lt.s32.totalorder %v1009, 24
      %vm1030 = vmand %vm1028, %vm1029
      %vm1031 = vmand %vm761, %vm1030
      %vm1032 = vmand %vm762, %vm1030
      %vm1033 = vmand %vm763, %vm1030
      %vm1034 = vmand %vm764, %vm1030
      %vm1035 = vmor %vm1024, %vm1031
      %vm1036 = vmor %vm1025, %vm1032
      %vm1037 = vmor %vm1026, %vm1033
      %vm1038 = vmor %vm1027, %vm1034
      %vm1039 = vcmp.ge.s32.totalorder %v1009, 24
      %vm1040 = vcmp.lt.s32.totalorder %v1009, 32
      %vm1041 = vmand %vm1039, %vm1040
      %vm1042 = vmand %vm779, %vm1041
      %vm1043 = vmand %vm780, %vm1041
      %vm1044 = vmand %vm781, %vm1041
      %vm1045 = vmand %vm782, %vm1041
      %vm1046 = vmor %vm1035, %vm1042
      %vm1047 = vmor %vm1036, %vm1043
      %vm1048 = vmor %vm1037, %vm1044
      %vm1049 = vmor %vm1038, %vm1045
      %v1050 = vsel %vm1046, %v1004, -1e+30
      %v1051 = vsel %vm1047, %v1005, -1e+30
      %v1052 = vsel %vm1048, %v1006, -1e+30
      %v1053 = vsel %vm1049, %v1007, -1e+30
      %v1054 = vsel %vm377, %v1050, -inf
      %1055 = vmax.xlane.f32.xlu0 %v1054
      %v1056 = vpop.xlane.xlu0 %1055
      %v1057 = vsel %vm377, %v1051, -inf
      %1058 = vmax.xlane.f32.xlu0 %v1057
      %v1059 = vpop.xlane.xlu0 %1058
      %v1060 = vsel %vm377, %v1052, -inf
      %1061 = vmax.xlane.f32.xlu0 %v1060
      %v1062 = vpop.xlane.xlu0 %1061
      %v1063 = vsel %vm377, %v1053, -inf
      %1064 = vmax.xlane.f32.xlu0 %v1063
      %v1065 = vpop.xlane.xlu0 %1064
      %v1066 = vsub.f32 %v1050, %v1056
      %v1067 = vsub.f32 %v1051, %v1059
      %v1068 = vsub.f32 %v1052, %v1062
      %v1069 = vsub.f32 %v1053, %v1065
      %v1070 = vmul.f32 %v1066, 1.442695
      %v1071 = vpow.pop %v1070
      %v1072 = vmul.f32 %v1067, 1.442695
      %v1073 = vpow.pop %v1072
      %v1074 = vmul.f32 %v1068, 1.442695
      %v1075 = vpow.pop %v1074
      %v1076 = vmul.f32 %v1069, 1.442695
      %v1077 = vpow.pop %v1076
      %v1078 = vsel %vm377, %v1071, 0.0
      %1079 = vadd.xlane.f32.xlu0 %v1078
      %v1080 = vpop.xlane.xlu0 %1079
      %v1081 = vsel %vm377, %v1073, 0.0
      %1082 = vadd.xlane.f32.xlu0 %v1081
      %v1083 = vpop.xlane.xlu0 %1082
      %v1084 = vsel %vm377, %v1075, 0.0
      %1085 = vadd.xlane.f32.xlu0 %v1084
      %v1086 = vpop.xlane.xlu0 %1085
      %v1087 = vsel %vm377, %v1077, 0.0
      %1088 = vadd.xlane.f32.xlu0 %v1087
      %v1089 = vpop.xlane.xlu0 %1088
      %v1090 = vrcp.pop %v1080
      %v1091 = vrcp.pop %v1083
      %v1092 = vrcp.pop %v1086
      %v1093 = vrcp.pop %v1089
      %v1094 = vmul.f32 %v1071, %v1090
      %v1095 = vmul.f32 %v1073, %v1091
      %v1096 = vmul.f32 %v1075, %v1092
      %v1097 = vmul.f32 %v1077, %v1093
      %v1099 = vsel %vm377, %v1094, 0
      %v1102 = vsel %vm377, %v1095, 0
      %v1105 = vsel %vm377, %v1096, 0
      %v1108 = vsel %vm377, %v1097, 0
      %1110 = vmatprep.subr.mxu0 0.0
      %1111 = vmatpush1.msra.mxu0 0.0
      %1112 = vmatprep.subr.mxu0 0.0
      %1113 = vmatpush1.msra.mxu0 0.0
      %1114 = vmatprep.subr.mxu0 0.0
      %1115 = vmatpush1.msra.mxu0 0.0
      %1116 = vmatprep.subr.mxu0 0.0
      %1117 = vmatpush1.msra.mxu0 0.0
      %1118 = vmatprep.subr.mxu0 0.0
      %1119 = vmatpush1.msra.mxu0 0.0
      %1120 = vmatprep.subr.mxu0 0.0
      %1121 = vmatpush1.msra.mxu0 0.0
      %1122 = vmatprep.subr.mxu0 0.0
      %1123 = vmatpush1.msra.mxu0 0.0
      %1124 = vmatprep.subr.mxu0 0.0
      %1125 = vmatpush1.msra.mxu0 0.0
      %1126 = vmatprep.subr.mxu0 0.0
      %1127 = vmatpush1.msra.mxu0 0.0
      %1128 = vmatprep.subr.mxu0 0.0
      %1129 = vmatpush1.msra.mxu0 0.0
      %1130 = vmatprep.subr.mxu0 0.0
      %1131 = vmatpush1.msra.mxu0 0.0
      %1132 = vmatprep.subr.mxu0 0.0
      %1133 = vmatpush1.msra.mxu0 0.0
      %1134 = vmatprep.subr.mxu0 %v670
      %1135 = vmatpush1.msra.mxu0 %v668
      %1136 = vmatprep.subr.mxu0 %v664
      %1137 = vmatpush1.msra.mxu0 %v662
      %1138 = vmatprep.subr.mxu0 %v658
      %1139 = vmatpush1.msra.mxu0 %v656
      %1140 = vmatprep.subr.mxu0 %v652
      %1141 = vmatpush1.msra.mxu0 %v650
      %1142 = vmatprep.subr.mxu0 0.0
      %1143 = vmatpush2.msra.mxu0 0.0
      %1144 = vmatprep.subr.mxu0 0.0
      %1145 = vmatpush2.msra.mxu0 0.0
      %1146 = vmatprep.subr.mxu0 0.0
      %1147 = vmatpush2.msra.mxu0 0.0
      %1148 = vmatprep.subr.mxu0 0.0
      %1149 = vmatpush2.msra.mxu0 0.0
      %1150 = vmatprep.subr.mxu0 0.0
      %1151 = vmatpush2.msra.mxu0 0.0
      %1152 = vmatprep.subr.mxu0 0.0
      %1153 = vmatpush2.msra.mxu0 0.0
      %1154 = vmatprep.subr.mxu0 0.0
      %1155 = vmatpush2.msra.mxu0 0.0
      %1156 = vmatprep.subr.mxu0 0.0
      %1157 = vmatpush2.msra.mxu0 0.0
      %1158 = vmatprep.subr.mxu0 0.0
      %1159 = vmatpush2.msra.mxu0 0.0
      %1160 = vmatprep.subr.mxu0 0.0
      %1161 = vmatpush2.msra.mxu0 0.0
      %1162 = vmatprep.subr.mxu0 0.0
      %1163 = vmatpush2.msra.mxu0 0.0
      %1164 = vmatprep.subr.mxu0 0.0
      %1165 = vmatpush2.msra.mxu0 0.0
      %1166 = vmatprep.subr.mxu0 0.0
      %1167 = vmatpush2.msra.mxu0 0.0
      %1168 = vmatprep.subr.mxu0 0.0
      %1169 = vmatpush2.msra.mxu0 0.0
      %1170 = vmatprep.subr.mxu0 0.0
      %1171 = vmatpush2.msra.mxu0 0.0
      %1172 = vmatprep.subr.mxu0 0.0
      %1173 = vmatpush2.msra.mxu0 0.0
      %1174 = vmatprep.mubr.f32.mxu0 0.0
      %1175 = vmatmul.mubr.f32.gmra.mxu0 %v1099
      %v1176 = vpop.f32.mrf.mxu0
      %v1177 = vadd.f32 0.0, %v1176
      %v1178 = vpop.f32.mrf.mxu0
      %v1179 = vadd.f32 0.0, %v1178
      %1180 = vmatprep.mubr.f32.mxu0 0.0
      %1181 = vmatmul.mubr.f32.gmra.mxu0 %v1102
      %v1182 = vpop.f32.mrf.mxu0
      %v1183 = vadd.f32 0.0, %v1182
      %v1184 = vpop.f32.mrf.mxu0
      %v1185 = vadd.f32 0.0, %v1184
      %1186 = vmatprep.mubr.f32.mxu0 0.0
      %1187 = vmatmul.mubr.f32.gmra.mxu0 %v1105
      %v1188 = vpop.f32.mrf.mxu0
      %v1189 = vadd.f32 0.0, %v1188
      %v1190 = vpop.f32.mrf.mxu0
      %v1191 = vadd.f32 0.0, %v1190
      %1192 = vmatprep.mubr.f32.mxu0 0.0
      %1193 = vmatmul.mubr.f32.gmra.mxu0 %v1108
      %v1194 = vpop.f32.mrf.mxu0
      %v1195 = vadd.f32 0.0, %v1194
      %v1196 = vpop.f32.mrf.mxu0
      %v1197 = vadd.f32 0.0, %v1196
      %1198 = vdwg.mxu0
      %v1199 = vld [vmem:[%s7] sm:$0xff]
      %v1200 = vld [vmem:[%s7 + $0x8] sm:$0xff]
      %v1201 = vld [vmem:[%s7 + $0x10] sm:$0xff]
      %v1202 = vld [vmem:[%s7 + $0x18] sm:$0xff]
      %v1203 = vld [vmem:[%s8] sm:$0xff]
      %v1204 = vld [vmem:[%s8 + $0x8] sm:$0xff]
      %v1205 = vld [vmem:[%s8 + $0x10] sm:$0xff]
      %v1206 = vld [vmem:[%s8 + $0x18] sm:$0xff]
      %1208 = vset.pattern.permute.xlu0 0
      %1209 = vperm.xlu0 %1208, %v1203
      %v1210 = vpop.permute.xlu0 %1209
      %1213 = vset.pattern.permute.xlu0 0
      %1214 = vperm.xlu0 %1213, %v1204
      %v1215 = vpop.permute.xlu0 %1214
      %1218 = vset.pattern.permute.xlu0 0
      %1219 = vperm.xlu0 %1218, %v1205
      %v1220 = vpop.permute.xlu0 %1219
      %1223 = vset.pattern.permute.xlu0 0
      %1224 = vperm.xlu0 %1223, %v1206
      %v1225 = vpop.permute.xlu0 %1224
      %v1228 = vsel %vm377, %v1199, 0
      %v1231 = vsel %vm377, %v1200, 0
      %v1234 = vsel %vm377, %v1201, 0
      %v1237 = vsel %vm377, %v1202, 0
      %1239 = vmatprep.subr.mxu0 0.0
      %1240 = vmatpush1.msra.mxu0 0.0
      %1241 = vmatprep.subr.mxu0 0.0
      %1242 = vmatpush1.msra.mxu0 0.0
      %1243 = vmatprep.subr.mxu0 0.0
      %1244 = vmatpush1.msra.mxu0 0.0
      %1245 = vmatprep.subr.mxu0 0.0
      %1246 = vmatpush1.msra.mxu0 0.0
      %1247 = vmatprep.subr.mxu0 0.0
      %1248 = vmatpush1.msra.mxu0 0.0
      %1249 = vmatprep.subr.mxu0 0.0
      %1250 = vmatpush1.msra.mxu0 0.0
      %1251 = vmatprep.subr.mxu0 0.0
      %1252 = vmatpush1.msra.mxu0 0.0
      %1253 = vmatprep.subr.mxu0 0.0
      %1254 = vmatpush1.msra.mxu0 0.0
      %1255 = vmatprep.subr.mxu0 0.0
      %1256 = vmatpush1.msra.mxu0 0.0
      %1257 = vmatprep.subr.mxu0 0.0
      %1258 = vmatpush1.msra.mxu0 0.0
      %1259 = vmatprep.subr.mxu0 0.0
      %1260 = vmatpush1.msra.mxu0 0.0
      %1261 = vmatprep.subr.mxu0 0.0
      %1262 = vmatpush1.msra.mxu0 0.0
      %1263 = vmatprep.subr.mxu0 %v1197
      %1264 = vmatpush1.msra.mxu0 %v1195
      %1265 = vmatprep.subr.mxu0 %v1191
      %1266 = vmatpush1.msra.mxu0 %v1189
      %1267 = vmatprep.subr.mxu0 %v1185
      %1268 = vmatpush1.msra.mxu0 %v1183
      %1269 = vmatprep.subr.mxu0 %v1179
      %1270 = vmatpush1.msra.mxu0 %v1177
      %1271 = vmatprep.subr.mxu0 0.0
      %1272 = vmatpush2.msra.mxu0 0.0
      %1273 = vmatprep.subr.mxu0 0.0
      %1274 = vmatpush2.msra.mxu0 0.0
      %1275 = vmatprep.subr.mxu0 0.0
      %1276 = vmatpush2.msra.mxu0 0.0
      %1277 = vmatprep.subr.mxu0 0.0
      %1278 = vmatpush2.msra.mxu0 0.0
      %1279 = vmatprep.subr.mxu0 0.0
      %1280 = vmatpush2.msra.mxu0 0.0
      %1281 = vmatprep.subr.mxu0 0.0
      %1282 = vmatpush2.msra.mxu0 0.0
      %1283 = vmatprep.subr.mxu0 0.0
      %1284 = vmatpush2.msra.mxu0 0.0
      %1285 = vmatprep.subr.mxu0 0.0
      %1286 = vmatpush2.msra.mxu0 0.0
      %1287 = vmatprep.subr.mxu0 0.0
      %1288 = vmatpush2.msra.mxu0 0.0
      %1289 = vmatprep.subr.mxu0 0.0
      %1290 = vmatpush2.msra.mxu0 0.0
      %1291 = vmatprep.subr.mxu0 0.0
      %1292 = vmatpush2.msra.mxu0 0.0
      %1293 = vmatprep.subr.mxu0 0.0
      %1294 = vmatpush2.msra.mxu0 0.0
      %1295 = vmatprep.subr.mxu0 0.0
      %1296 = vmatpush2.msra.mxu0 0.0
      %1297 = vmatprep.subr.mxu0 0.0
      %1298 = vmatpush2.msra.mxu0 0.0
      %1299 = vmatprep.subr.mxu0 0.0
      %1300 = vmatpush2.msra.mxu0 0.0
      %1301 = vmatprep.subr.mxu0 0.0
      %1302 = vmatpush2.msra.mxu0 0.0
      %1303 = vmatprep.mubr.f32.mxu0 0.0
      %1304 = vmatmul.mubr.f32.gmra.mxu0 %v1228
      %v1305 = vpop.f32.mrf.mxu0
      %v1306 = vadd.f32 %v1210, %v1305
      %v1307 = vpop.f32.mrf.mxu0
      %v1308 = vadd.f32 %v1210, %v1307
      %1309 = vmatprep.mubr.f32.mxu0 0.0
      %1310 = vmatmul.mubr.f32.gmra.mxu0 %v1231
      %v1311 = vpop.f32.mrf.mxu0
      %v1312 = vadd.f32 %v1215, %v1311
      %v1313 = vpop.f32.mrf.mxu0
      %v1314 = vadd.f32 %v1215, %v1313
      %1315 = vmatprep.mubr.f32.mxu0 0.0
      %1316 = vmatmul.mubr.f32.gmra.mxu0 %v1234
      %v1317 = vpop.f32.mrf.mxu0
      %v1318 = vadd.f32 %v1220, %v1317
      %v1319 = vpop.f32.mrf.mxu0
      %v1320 = vadd.f32 %v1220, %v1319
      %1321 = vmatprep.mubr.f32.mxu0 0.0
      %1322 = vmatmul.mubr.f32.gmra.mxu0 %v1237
      %v1323 = vpop.f32.mrf.mxu0
      %v1324 = vadd.f32 %v1225, %v1323
      %v1325 = vpop.f32.mrf.mxu0
      %v1326 = vadd.f32 %v1225, %v1325
      %1327 = vdwg.mxu0
      %1328 = vst [vmem:[%s332] sm:$0xff] %v1306
      %1329 = vst [vmem:[%s332 + $0x8] sm:$0xff] %v1308
      %1330 = vst [vmem:[%s332 + $0x10] sm:$0xff] %v1312
      %1331 = vst [vmem:[%s332 + $0x18] sm:$0xff] %v1314
      %1332 = vst [vmem:[%s332 + $0x20] sm:$0xff] %v1318
      %1333 = vst [vmem:[%s332 + $0x28] sm:$0xff] %v1320
      %1334 = vst [vmem:[%s332 + $0x30] sm:$0xff] %v1324
      %1335 = vst [vmem:[%s332 + $0x38] sm:$0xff] %v1326
      %p1336 = scmp.lt.s32.totalorder %s26, 1
      %s1337 = scalar_select %p1336, %s26, 1
      %s1338 = smul.addr %s1337, 8
      %s1339 = smul.addr %s1338, 8
      %s1340 = scalar_lea.vmem %s9, %s1339
      // Predicated region
      $region53: #{mutual_attention_forward.1} parent=51 // pred_check
        %p1341 = pneg %p222
      $region54: #{mutual_attention_forward.1} parent=51 // pred_check_branch
        %1343 = sbr.rel (%p1341) target = $region56
      $region55: #{mutual_attention_forward.1} parent=51 // pred_region
        _
      $region56: #{mutual_attention_forward.1} parent=51 // pred_fallthru
        _
    $region52: #{mutual_attention_forward.1} parent=5 // pred_fallthru
      _
    %p1344 = scmp.le.s32.totalorder 2, %s21
    // Predicated region
    $region57: #{mutual_attention_forward.1} parent=5 // pred_check
      %p1345 = pneg %p1344
    $region58: #{mutual_attention_forward.1} parent=5 // pred_check_branch
      %1347 = sbr.rel (%p1345) target = $region60
    $region59: #{mutual_attention_forward.1} parent=5 // pred_region
      %s1348 = ssub.s32 %s21, 2
      // Predicated region
      $region61: #{mutual_attention_forward.1} parent=59 // pred_check
        %p1349 = pneg %p228
      $region62: #{mutual_attention_forward.1} parent=59 // pred_check_branch
        %1351 = sbr.rel (%p1349) target = $region64
      $region63: #{mutual_attention_forward.1} parent=59 // pred_region
        %p1352 = scmp.lt.s32.totalorder %s27, 1
        %s1353 = scalar_select %p1352, %s27, 1
        %s1354 = smul.addr %s1353, 8
        %s1355 = smul.addr %s1354, 8
        %s1356 = scalar_lea.vmem %s9, %s1355
      $region64: #{mutual_attention_forward.1} parent=59 // pred_fallthru
        _
    $region60: #{mutual_attention_forward.1} parent=5 // pred_fallthru
      _
  $region6: #{mutual_attention_forward.1} parent=0 // loop_footer
    %s25 = sadd.s32 1, %s21
  $region7: #{mutual_attention_forward.1} parent=0 // loop_footer_branch
    %20 = sbr.rel target = $region3
  $region8: #{mutual_attention_forward.1} parent=0 // loop_exit
    _

</llo_original>
